<compile_context>
chip_gen: v5e
topology: v5e:2x2
jax: 0.10.0
libtpu: 0.0.40
codegen_flags: <defaults>
</compile_context>

<pallas_src>
import jax
import jax.numpy as jnp
import numpy as np
from jax.experimental import pallas as pl
from jax.experimental.pallas import tpu as pltpu


# ----------------------------------------------------------------------------
# Kernel
# ----------------------------------------------------------------------------
def gcell_kernel(g_ref, cg_ref, h_ref, c_ref, bias_ref,
                 wall_ref, uall_ref, uball_ref, u_ref, ub_ref,
                 newg_ref, newc_ref):
    g = g_ref[...].astype(jnp.float32)          # (tb, H)
    c_g = cg_ref[...].astype(jnp.float32)       # (tb, H)
    h_bf = h_ref[...]                           # (tb, T, H)  (bf16 stream)
    tb, T, H = h_bf.shape

    # ---- gate path: two fused wide matmuls (lane-dense results) -------------
    # g @ [Wf | Wo | w] -> (tb, 3H)
    gW = jnp.dot(g, wall_ref[...], preferred_element_type=jnp.float32)
    # mean over the word axis, accumulated in f32
    h_avg = jnp.mean(h_bf.astype(jnp.float32), axis=1)                  # (tb, H)
    # h_avg @ [Uf | Uo] -> (tb, 2H)
    hU = jnp.dot(h_avg, uall_ref[...], preferred_element_type=jnp.float32)
    fo = jax.nn.sigmoid(gW[:, :2 * H] + hU + uball_ref[...])            # (tb, 2H)
    f = fo[:, :H]                                                       # (tb, H)
    o = fo[:, H:]                                                       # (tb, H)
    wg = gW[:, 2 * H:]                                                  # (tb, H)

    # ---- word-attention path -------------------------------------------------
    # One big bf16 MXU matmul: (tb*T, H) @ (H, H), f32 accumulation.
    uh = jnp.dot(h_bf.reshape(tb * T, H), u_ref[...],
                 preferred_element_type=jnp.float32).reshape(tb, T, H)
    # additive mask bias: 0 for valid words, -1e16 for padding
    logits = jax.nn.sigmoid(wg[:, None, :] + uh + ub_ref[...]) + bias_ref[...]

    # sigmoid outputs are <= 1 (masked lanes sit at ~-1e16), so exp cannot
    # overflow and padded words underflow to exactly 0: no max-subtraction.
    e = jnp.exp(logits)                                                 # (tb, T, H)
    denom = jnp.maximum(jnp.sum(e, axis=1, keepdims=True), 1e-30)       # (tb, 1, H)
    f_w = e * pl.reciprocal(denom, approx=True)                         # softmax over T

    c_f32 = c_ref[...].astype(jnp.float32)                              # (tb, T, H)
    new_c = f * c_g + jnp.sum(c_f32 * f_w, axis=1)                      # (tb, H)
    new_g = o * jnp.tanh(new_c)                                         # (tb, H)

    newg_ref[...] = new_g.astype(newg_ref.dtype)
    newc_ref[...] = new_c.astype(newc_ref.dtype)


# ----------------------------------------------------------------------------
# Wrapper
# ----------------------------------------------------------------------------
def gcell_forward(g, c_g, h, c, mask, params, *, tile_b=None,
                  stream_dtype=jnp.bfloat16):
    """GCell forward. g/c_g: (B,H), h/c: (B,T,H), mask: (B,T) float {0,1}."""
    B, T, H = h.shape

    # Fused, pre-transposed weights (computed once in the wrapper).
    w_all = jnp.concatenate([params["Wf"], params["Wo"], params["w"]], axis=-1)   # (H, 3H) f32
    u_all = jnp.concatenate([params["Uf"], params["Uo"]], axis=-1)                # (H, 2H) f32
    ub_all = jnp.concatenate([params["Ubf"], params["Ubo"]], axis=-1)             # (1, 2H) f32
    u_w = params["u"].astype(stream_dtype)                                        # (H, H)  bf16
    u_b = params["ub"].astype(jnp.float32)                                        # (1, H)  f32

    # Precomputed additive mask bias: (B, T, 1), 0 valid / -1e16 padding.
    bias = ((mask.astype(jnp.float32) - 1.0) * 1e16)[..., None]

    # Dominant HBM streams in bf16.
    h_s = h.astype(stream_dtype)
    c_s = c.astype(stream_dtype)

    # ---- tile_B selection against a conservative VMEM budget (v7x: 64 MiB/TC)
    if tile_b is None:
        budget = 20 * 1024 * 1024
        fixed = 48 * H * H                  # fused weights, double-buffered (rough)
        per_b = 32 * T * H                  # bf16 h/c x2 buffers + f32 temporaries
        cap = max(1, (budget - fixed) // per_b)
        divisors = [d for d in range(1, B + 1) if B % d == 0 and d <= cap]
        nice = [d for d in divisors if d % 8 == 0 or d == B]
        tile_b = max(nice) if nice else (max(divisors) if divisors else B)

    grid = (B // tile_b,)

    bspec_bh = pl.BlockSpec((tile_b, H), lambda i: (i, 0))
    bspec_bth = pl.BlockSpec((tile_b, T, H), lambda i: (i, 0, 0))
    bspec_bias = pl.BlockSpec((tile_b, T, 1), lambda i: (i, 0, 0))

    def full2(r, cdim):
        return pl.BlockSpec((r, cdim), lambda i: (0, 0))

    in_specs = [
        bspec_bh, bspec_bh,                 # g, c_g
        bspec_bth, bspec_bth,               # h, c   (bf16 streams)
        bspec_bias,                         # mask bias
        full2(H, 3 * H),                    # [Wf | Wo | w]
        full2(H, 2 * H),                    # [Uf | Uo]
        full2(1, 2 * H),                    # [Ubf | Ubo]
        full2(H, H),                        # u
        full2(1, H),                        # ub
    ]
    out_specs = (bspec_bh, bspec_bh)
    out_shape = (jax.ShapeDtypeStruct((B, H), jnp.float32),
                 jax.ShapeDtypeStruct((B, H), jnp.float32))

    return pl.pallas_call(
        gcell_kernel,
        grid=grid,
        in_specs=in_specs,
        out_specs=out_specs,
        out_shape=out_shape,
        compiler_params=pltpu.CompilerParams(
            dimension_semantics=("parallel",),      # v7x: shard B across 2 TCs
            vmem_limit_bytes=32 * 1024 * 1024),
    )(g, c_g, h_s, c_s, bias, w_all, u_all, ub_all, u_w, u_b)


# ----------------------------------------------------------------------------
# Pure-JAX reference (mirrors the PyTorch forward)
# ----------------------------------------------------------------------------
def gcell_reference(g, c_g, h, c, mask, params):
    h_avg = jnp.mean(h, axis=1)
    Wt = jnp.concatenate([params["Wf"], params["Wo"]], axis=-1)
    Ut = jnp.concatenate([params["Uf"], params["Uo"]], axis=-1)
    Ub = jnp.concatenate([params["Ubf"], params["Ubo"]], axis=-1)
    fo = jax.nn.sigmoid(g @ Wt + h_avg @ Ut + Ub)
    H = g.shape[-1]
    f, o = fo[:, :H], fo[:, H:]
    f_w = jax.nn.sigmoid((g @ params["w"])[:, None, :]
                         + jnp.einsum('bth,hk->btk', h, params["u"]) + params["ub"])
    f_w = f_w - ((1.0 - mask) * 1e16)[..., None]
    f_w = jax.nn.softmax(f_w, axis=1)
    new_c = f * c_g + jnp.sum(c * f_w, axis=1)
    new_g = o * jnp.tanh(new_c)
    return new_g, new_c


def make_params(key, H):
    """Deterministic init following nn.Linear's U(-1/sqrt(in), 1/sqrt(in))."""
    ks = jax.random.split(key, 6)
    s = 1.0 / np.sqrt(H)
    W_weight = jax.random.uniform(ks[0], (2 * H, H), jnp.float32, -s, s)  # Linear(H,2H, no bias)
    w_weight = jax.random.uniform(ks[1], (H, H), jnp.float32, -s, s)      # Linear(H,H, no bias)
    U_weight = jax.random.uniform(ks[2], (2 * H, H), jnp.float32, -s, s)  # Linear(H,2H)
    U_bias = jax.random.uniform(ks[3], (2 * H,), jnp.float32, -s, s)
    u_weight = jax.random.uniform(ks[4], (H, H), jnp.float32, -s, s)      # Linear(H,H)
    u_bias = jax.random.uniform(ks[5], (H,), jnp.float32, -s, s)

    Wt = W_weight.T                      # (H, 2H): y = x @ W.T
    Ut = U_weight.T
    return {
        "Wf": Wt[:, :H], "Wo": Wt[:, H:],
        "w": w_weight.T,
        "Uf": Ut[:, :H], "Uo": Ut[:, H:],
        "Ubf": U_bias[:H].reshape(1, H), "Ubo": U_bias[H:].reshape(1, H),
        "u": u_weight.T,
        "ub": u_bias.reshape(1, H),
    }


if __name__ == "__main__":
    # Lane-dense hidden (multiple of 128) and a batch large enough to exercise
    # the gridded / pipelined path (grid = B / tile_B = 2).
    B, T, H = 16, 8, 128
    key = jax.random.PRNGKey(0)
    k_g, k_cg, k_h, k_c, k_p = jax.random.split(key, 5)

    g = jax.random.normal(k_g, (B, H), jnp.float32)
    c_g = jax.random.normal(k_cg, (B, H), jnp.float32)
    h = jax.random.normal(k_h, (B, T, H), jnp.float32)
    c = jax.random.normal(k_c, (B, T, H), jnp.float32)
    # mask: even batch rows fully valid, odd rows padded after 5 words
    lengths = jnp.where(jnp.arange(B) % 2 == 0, T, 5)
    mask = (jnp.arange(T)[None, :] < lengths[:, None]).astype(jnp.float32)

    params = make_params(k_p, H)

    fwd = jax.jit(lambda g_, cg_, h_, c_, m_, p_: gcell_forward(
        g_, cg_, h_, c_, m_, p_, tile_b=8))
    new_g, new_c = fwd(g, c_g, h, c, mask, params)
    jax.block_until_ready((new_g, new_c))

    # Reference on the same bf16-quantized streams (kernel stores h/c/u in bf16;
    # gate/softmax math stays f32, approx reciprocal in the softmax denom).
    h_q = h.astype(jnp.bfloat16).astype(jnp.float32)
    c_q = c.astype(jnp.bfloat16).astype(jnp.float32)
    params_q = dict(params)
    params_q["u"] = params["u"].astype(jnp.bfloat16).astype(jnp.float32)
    ref_g, ref_c = gcell_reference(g, c_g, h_q, c_q, mask, params_q)

    np.testing.assert_allclose(np.asarray(new_g), np.asarray(ref_g),
                               atol=1e-2, rtol=1e-2)
    np.testing.assert_allclose(np.asarray(new_c), np.asarray(ref_c),
                               atol=1e-2, rtol=1e-2)

    print("KERNEL_OK")
</pallas_src>

<mosaic_0001>
module attributes {stable_mosaic.version = 11 : i64} {
  func.func @gcell_kernel(%arg0: i32, %arg1: memref<8x128xf32, #tpu.memory_space<vmem>>, %arg2: memref<8x128xf32, #tpu.memory_space<vmem>>, %arg3: memref<8x8x128xbf16, #tpu.memory_space<vmem>>, %arg4: memref<8x8x128xbf16, #tpu.memory_space<vmem>>, %arg5: memref<8x8x1xf32, #tpu.memory_space<vmem>>, %arg6: memref<128x384xf32, #tpu.memory_space<vmem>>, %arg7: memref<128x256xf32, #tpu.memory_space<vmem>>, %arg8: memref<1x256xf32, #tpu.memory_space<vmem>>, %arg9: memref<128x128xbf16, #tpu.memory_space<vmem>>, %arg10: memref<1x128xf32, #tpu.memory_space<vmem>>, %arg11: memref<8x128xf32, #tpu.memory_space<vmem>>, %arg12: memref<8x128xf32, #tpu.memory_space<vmem>>) attributes {dimension_semantics = [#tpu.dimension_semantics<parallel>], iteration_bounds = array<i64: 2>, scalar_prefetch = 0 : i64, scratch_operands = 0 : i64, tpu.core_type = #tpu.core_type<tc>, window_params = [{transform_indices = @transform_0, window_bounds = array<i64: 8, 128>}, {transform_indices = @transform_1, window_bounds = array<i64: 8, 128>}, {transform_indices = @transform_2, window_bounds = array<i64: 8, 8, 128>}, {transform_indices = @transform_3, window_bounds = array<i64: 8, 8, 128>}, {transform_indices = @transform_4, window_bounds = array<i64: 8, 8, 1>}, {pipeline_mode = #tpu.pipeline_mode<synchronous>, transform_indices = @transform_5, window_bounds = array<i64: 128, 384>}, {pipeline_mode = #tpu.pipeline_mode<synchronous>, transform_indices = @transform_6, window_bounds = array<i64: 128, 256>}, {pipeline_mode = #tpu.pipeline_mode<synchronous>, transform_indices = @transform_7, window_bounds = array<i64: 1, 256>}, {pipeline_mode = #tpu.pipeline_mode<synchronous>, transform_indices = @transform_8, window_bounds = array<i64: 128, 128>}, {pipeline_mode = #tpu.pipeline_mode<synchronous>, transform_indices = @transform_9, window_bounds = array<i64: 1, 128>}, {transform_indices = @transform_10, window_bounds = array<i64: 8, 128>}, {transform_indices = @transform_11, window_bounds = array<i64: 8, 128>}]} {
    %c0 = arith.constant 0 : index
    %c0_0 = arith.constant 0 : index
    %0 = vector.load %arg1[%c0, %c0_0] : memref<8x128xf32, #tpu.memory_space<vmem>>, vector<8x128xf32>
    %c0_1 = arith.constant 0 : index
    %c0_2 = arith.constant 0 : index
    %1 = vector.load %arg2[%c0_1, %c0_2] : memref<8x128xf32, #tpu.memory_space<vmem>>, vector<8x128xf32>
    %c0_3 = arith.constant 0 : index
    %c0_4 = arith.constant 0 : index
    %c0_5 = arith.constant 0 : index
    %2 = vector.load %arg3[%c0_3, %c0_4, %c0_5] : memref<8x8x128xbf16, #tpu.memory_space<vmem>>, vector<8x8x128xbf16>
    %c0_6 = arith.constant 0 : index
    %c0_7 = arith.constant 0 : index
    %3 = vector.load %arg6[%c0_6, %c0_7] : memref<128x384xf32, #tpu.memory_space<vmem>>, vector<128x384xf32>
    %cst = arith.constant dense<0.000000e+00> : vector<8x384xf32>
    %4 = tpu.matmul %0, %3, %cst {dimension_numbers = #tpu.dot_dimension_numbers<[1], [0], [0], [1], [0, 0, 1, 1], [], []>} : vector<8x128xf32>, vector<128x384xf32>, vector<8x384xf32> -> vector<8x384xf32>
    %5 = arith.extf %2 : vector<8x8x128xbf16> to vector<8x8x128xf32>
    %cst_8 = arith.constant dense<0.000000e+00> : vector<8x128xf32>
    %6 = vector.multi_reduction <add>, %5, %cst_8 [1] : vector<8x8x128xf32> to vector<8x128xf32>
    %cst_9 = arith.constant 8.000000e+00 : f32
    %7 = vector.broadcast %cst_9 : f32 to vector<8x128xf32>
    %8 = arith.divf %6, %7 : vector<8x128xf32>
    %c0_10 = arith.constant 0 : index
    %c0_11 = arith.constant 0 : index
    %9 = vector.load %arg7[%c0_10, %c0_11] : memref<128x256xf32, #tpu.memory_space<vmem>>, vector<128x256xf32>
    %cst_12 = arith.constant dense<0.000000e+00> : vector<8x256xf32>
    %10 = tpu.matmul %8, %9, %cst_12 {dimension_numbers = #tpu.dot_dimension_numbers<[1], [0], [0], [1], [0, 0, 1, 1], [], []>} : vector<8x128xf32>, vector<128x256xf32>, vector<8x256xf32> -> vector<8x256xf32>
    %11 = vector.extract_strided_slice %4 {offsets = [0, 0], sizes = [8, 256], strides = [1, 1]} : vector<8x384xf32> to vector<8x256xf32>
    %12 = arith.addf %11, %10 : vector<8x256xf32>
    %c0_13 = arith.constant 0 : index
    %c0_14 = arith.constant 0 : index
    %13 = vector.load %arg8[%c0_13, %c0_14] : memref<1x256xf32, #tpu.memory_space<vmem>>, vector<1x256xf32>
    %14 = vector.broadcast %13 : vector<1x256xf32> to vector<8x256xf32>
    %15 = arith.addf %12, %14 : vector<8x256xf32>
    %16 = arith.negf %15 : vector<8x256xf32>
    %17 = math.exp %16 : vector<8x256xf32>
    %cst_15 = arith.constant 1.000000e+00 : f32
    %18 = vector.broadcast %cst_15 : f32 to vector<8x256xf32>
    %19 = arith.addf %18, %17 : vector<8x256xf32>
    %20 = arith.divf %18, %19 : vector<8x256xf32>
    %21 = vector.extract_strided_slice %20 {offsets = [0, 0], sizes = [8, 128], strides = [1, 1]} : vector<8x256xf32> to vector<8x128xf32>
    %22 = vector.extract_strided_slice %20 {offsets = [0, 128], sizes = [8, 128], strides = [1, 1]} : vector<8x256xf32> to vector<8x128xf32>
    %23 = vector.extract_strided_slice %4 {offsets = [0, 256], sizes = [8, 128], strides = [1, 1]} : vector<8x384xf32> to vector<8x128xf32>
    %24 = vector.shape_cast %2 : vector<8x8x128xbf16> to vector<64x128xbf16>
    %c0_16 = arith.constant 0 : index
    %c0_17 = arith.constant 0 : index
    %25 = vector.load %arg9[%c0_16, %c0_17] : memref<128x128xbf16, #tpu.memory_space<vmem>>, vector<128x128xbf16>
    %cst_18 = arith.constant dense<0.000000e+00> : vector<64x128xf32>
    %26 = tpu.matmul %24, %25, %cst_18 {dimension_numbers = #tpu.dot_dimension_numbers<[1], [0], [0], [1], [0, 0, 1, 1], [], []>} : vector<64x128xbf16>, vector<128x128xbf16>, vector<64x128xf32> -> vector<64x128xf32>
    %27 = vector.shape_cast %26 : vector<64x128xf32> to vector<8x8x128xf32>
    %28 = vector.shape_cast %23 : vector<8x128xf32> to vector<8x1x128xf32>
    %29 = vector.broadcast %28 : vector<8x1x128xf32> to vector<8x8x128xf32>
    %30 = arith.addf %29, %27 : vector<8x8x128xf32>
    %c0_19 = arith.constant 0 : index
    %c0_20 = arith.constant 0 : index
    %31 = vector.load %arg10[%c0_19, %c0_20] : memref<1x128xf32, #tpu.memory_space<vmem>>, vector<1x128xf32>
    %32 = vector.shape_cast %31 : vector<1x128xf32> to vector<1x1x128xf32>
    %33 = vector.broadcast %32 : vector<1x1x128xf32> to vector<8x8x128xf32>
    %34 = arith.addf %30, %33 : vector<8x8x128xf32>
    %35 = arith.negf %34 : vector<8x8x128xf32>
    %36 = math.exp %35 : vector<8x8x128xf32>
    %cst_21 = arith.constant 1.000000e+00 : f32
    %37 = vector.broadcast %cst_21 : f32 to vector<8x8x128xf32>
    %38 = arith.addf %37, %36 : vector<8x8x128xf32>
    %39 = arith.divf %37, %38 : vector<8x8x128xf32>
    %c0_22 = arith.constant 0 : index
    %c0_23 = arith.constant 0 : index
    %c0_24 = arith.constant 0 : index
    %40 = vector.load %arg5[%c0_22, %c0_23, %c0_24] : memref<8x8x1xf32, #tpu.memory_space<vmem>>, vector<8x8x1xf32>
    %41 = vector.broadcast %40 : vector<8x8x1xf32> to vector<8x8x128xf32>
    %42 = arith.addf %39, %41 : vector<8x8x128xf32>
    %43 = math.exp %42 : vector<8x8x128xf32>
    %cst_25 = arith.constant dense<0.000000e+00> : vector<8x128xf32>
    %44 = vector.multi_reduction <add>, %43, %cst_25 [1] : vector<8x8x128xf32> to vector<8x128xf32>
    %45 = vector.shape_cast %44 : vector<8x128xf32> to vector<8x1x128xf32>
    %cst_26 = arith.constant 1.000000e-30 : f32
    %46 = vector.broadcast %cst_26 : f32 to vector<8x1x128xf32>
    %47 = arith.maximumf %45, %46 : vector<8x1x128xf32>
    %48 = tpu.reciprocal %47 {approx = true} : vector<8x1x128xf32> -> vector<8x1x128xf32>
    %49 = vector.broadcast %48 : vector<8x1x128xf32> to vector<8x8x128xf32>
    %50 = arith.mulf %43, %49 : vector<8x8x128xf32>
    %c0_27 = arith.constant 0 : index
    %c0_28 = arith.constant 0 : index
    %c0_29 = arith.constant 0 : index
    %51 = vector.load %arg4[%c0_27, %c0_28, %c0_29] : memref<8x8x128xbf16, #tpu.memory_space<vmem>>, vector<8x8x128xbf16>
    %52 = arith.extf %51 : vector<8x8x128xbf16> to vector<8x8x128xf32>
    %53 = arith.mulf %21, %1 : vector<8x128xf32>
    %54 = arith.mulf %52, %50 : vector<8x8x128xf32>
    %cst_30 = arith.constant dense<0.000000e+00> : vector<8x128xf32>
    %55 = vector.multi_reduction <add>, %54, %cst_30 [1] : vector<8x8x128xf32> to vector<8x128xf32>
    %56 = arith.addf %53, %55 : vector<8x128xf32>
    %57 = math.tanh %56 : vector<8x128xf32>
    %58 = arith.mulf %22, %57 : vector<8x128xf32>
    %c0_31 = arith.constant 0 : index
    %c0_32 = arith.constant 0 : index
    %59 = vector.load %arg11[%c0_31, %c0_32] : memref<8x128xf32, #tpu.memory_space<vmem>>, vector<8x128xf32>
    tpu.vector_store %arg11[%c0_31, %c0_32], %58 {strides = array<i32>} : memref<8x128xf32, #tpu.memory_space<vmem>>, vector<8x128xf32>,
    %c0_33 = arith.constant 0 : index
    %c0_34 = arith.constant 0 : index
    %60 = vector.load %arg12[%c0_33, %c0_34] : memref<8x128xf32, #tpu.memory_space<vmem>>, vector<8x128xf32>
    tpu.vector_store %arg12[%c0_33, %c0_34], %56 {strides = array<i32>} : memref<8x128xf32, #tpu.memory_space<vmem>>, vector<8x128xf32>,
    return
  }
  func.func @transform_0(%arg0: i32) -> (i32, i32) {
    %c0_i32 = arith.constant 0 : i32
    %c0_i32_0 = arith.constant 0 : i32
    return %arg0, %c0_i32 : i32, i32
  }
  func.func @transform_1(%arg0: i32) -> (i32, i32) {
    %c0_i32 = arith.constant 0 : i32
    %c0_i32_0 = arith.constant 0 : i32
    return %arg0, %c0_i32 : i32, i32
  }
  func.func @transform_2(%arg0: i32) -> (i32, i32, i32) {
    %c0_i32 = arith.constant 0 : i32
    %c0_i32_0 = arith.constant 0 : i32
    %c0_i32_1 = arith.constant 0 : i32
    return %arg0, %c0_i32, %c0_i32_0 : i32, i32, i32
  }
  func.func @transform_3(%arg0: i32) -> (i32, i32, i32) {
    %c0_i32 = arith.constant 0 : i32
    %c0_i32_0 = arith.constant 0 : i32
    %c0_i32_1 = arith.constant 0 : i32
    return %arg0, %c0_i32, %c0_i32_0 : i32, i32, i32
  }
  func.func @transform_4(%arg0: i32) -> (i32, i32, i32) {
    %c0_i32 = arith.constant 0 : i32
    %c0_i32_0 = arith.constant 0 : i32
    %c0_i32_1 = arith.constant 0 : i32
    return %arg0, %c0_i32, %c0_i32_0 : i32, i32, i32
  }
  func.func @transform_5(%arg0: i32) -> (i32, i32) {
    %c0_i32 = arith.constant 0 : i32
    %c0_i32_0 = arith.constant 0 : i32
    %c0_i32_1 = arith.constant 0 : i32
    return %c0_i32, %c0_i32_0 : i32, i32
  }
  func.func @transform_6(%arg0: i32) -> (i32, i32) {
    %c0_i32 = arith.constant 0 : i32
    %c0_i32_0 = arith.constant 0 : i32
    %c0_i32_1 = arith.constant 0 : i32
    return %c0_i32, %c0_i32_0 : i32, i32
  }
  func.func @transform_7(%arg0: i32) -> (i32, i32) {
    %c0_i32 = arith.constant 0 : i32
    %c0_i32_0 = arith.constant 0 : i32
    %c0_i32_1 = arith.constant 0 : i32
    return %c0_i32, %c0_i32_0 : i32, i32
  }
  func.func @transform_8(%arg0: i32) -> (i32, i32) {
    %c0_i32 = arith.constant 0 : i32
    %c0_i32_0 = arith.constant 0 : i32
    %c0_i32_1 = arith.constant 0 : i32
    return %c0_i32, %c0_i32_0 : i32, i32
  }
  func.func @transform_9(%arg0: i32) -> (i32, i32) {
    %c0_i32 = arith.constant 0 : i32
    %c0_i32_0 = arith.constant 0 : i32
    %c0_i32_1 = arith.constant 0 : i32
    return %c0_i32, %c0_i32_0 : i32, i32
  }
  func.func @transform_10(%arg0: i32) -> (i32, i32) {
    %c0_i32 = arith.constant 0 : i32
    %c0_i32_0 = arith.constant 0 : i32
    return %arg0, %c0_i32 : i32, i32
  }
  func.func @transform_11(%arg0: i32) -> (i32, i32) {
    %c0_i32 = arith.constant 0 : i32
    %c0_i32_0 = arith.constant 0 : i32
    return %arg0, %c0_i32 : i32, i32
  }
}

</mosaic_0001>

<llo_original>
// kernel: _lambda_.1
$region0: #{_lambda_.1}
  #allocation0 [shape = 'u32[]', space=smem, size = 0x4, offset = 0x4, fixed_abs, tag = 'smem constant byte address 0x4 - core index']
  #allocation1 [shape = 'u32[72,128]{1,0:T(1,128)}', space=vmem, size = 0x9000, scoped, tag = 'internal scratch']
  %s0 = inlined_call_operand.vmem [shape: f32[16,128], index: 0, kind: input, shape index: {}]
  %s1 = inlined_call_operand.vmem [shape: f32[16,128], index: 1, kind: input, shape index: {}]
  %s2 = inlined_call_operand.vmem [shape: bf16[16,8,128], index: 2, kind: input, shape index: {}]
  %s3 = inlined_call_operand.vmem [shape: bf16[16,8,128], index: 3, kind: input, shape index: {}]
  %s4 = inlined_call_operand.vmem [shape: f32[16,8,1], index: 4, kind: input, shape index: {}]
  %s5 = inlined_call_operand.vmem [shape: f32[128,384], index: 5, kind: input, shape index: {}]
  %s6 = inlined_call_operand.vmem [shape: f32[128,256], index: 6, kind: input, shape index: {}]
  %s7 = inlined_call_operand.vmem [shape: f32[1,256], index: 7, kind: input, shape index: {}]
  %s8 = inlined_call_operand.vmem [shape: bf16[128,128], index: 8, kind: input, shape index: {}]
  %s9 = inlined_call_operand.vmem [shape: f32[1,128], index: 9, kind: input, shape index: {}]
  %s10 = inlined_call_operand.hbm [shape: f32[16,128], index: 10, kind: output, shape index: {0}]
  %s11 = inlined_call_operand.hbm [shape: f32[16,128], index: 11, kind: output, shape index: {1}]
  %12 = xla_tuple %s10, %s11
  %s13 = sld [smem:[#allocation0]]
  $region81: #{_lambda_.1} parent=0
    _
  %s15 = ssub.s32 1, %s13
  %s16 = scalar_select 0, %s15, %s13
  $region1: #{_lambda_.1} parent=0
    #allocation2 [shape = 'u8[8192]{0}', space=vmem, size = 0x2000, scoped, tag = 'output window, operand 0']
    #allocation3 [shape = 's32[2]{0}', space=sflag, size = 0x8, scoped, tag = 'scoped memory for _lambda_.1']
    #allocation4 [shape = 'u8[8192]{0}', space=vmem, size = 0x2000, scoped, tag = 'output window, operand 1']
    #allocation5 [shape = 's32[2]{0}', space=sflag, size = 0x8, scoped, tag = 'scoped memory for _lambda_.1']
    %17 = vsyncpa [#allocation3], 0
    %s18 = scalar_lea.sflag [#allocation3], 1
    %19 = vsyncpa %s18, 0
    %20 = vsyncpa [#allocation5], 0
    %s21 = scalar_lea.sflag [#allocation5], 1
    %22 = vsyncpa %s21, 0
    loop: start=0, step=1, limit=4
    $region2: #{_lambda_.1} parent=1 // loop_pre_header
      _
    $region3: #{_lambda_.1} parent=1 // loop_header
      %s24 = sphi 0, %s28
      %p25 = scmp.ge.s32.totalorder %s24, 4
      %s34 = sphi 0, %s36
      %s37 = sphi 0, %s34
      %s38 = sphi 0, %s37
      %s54 = sphi 0, %s38
      %s60 = sphi 0, %s62
      %s63 = sphi 0, %s60
      %s64 = sphi 0, %s63
      %s80 = sphi 0, %s64
      %s86 = sphi 0, %s88
      %s89 = sphi 0, %s86
      %s90 = sphi 0, %s89
      %s106 = sphi 0, %s90
      %s112 = sphi 0, %s114
      %s115 = sphi 0, %s112
      %s116 = sphi 0, %s115
      %s132 = sphi 0, %s116
      %s138 = sphi 0, %s140
      %s141 = sphi 0, %s138
      %s142 = sphi 0, %s141
      %s158 = sphi 0, %s142
      %s162 = sphi 0, %s162
      %s164 = sphi 0, %s162
      %s165 = sphi 0, %s164
      %s179 = sphi 0, %s165
      %s183 = sphi 0, %s183
      %s185 = sphi 0, %s183
      %s186 = sphi 0, %s185
      %s200 = sphi 0, %s186
      %s204 = sphi 0, %s204
      %s206 = sphi 0, %s204
      %s207 = sphi 0, %s206
      %s221 = sphi 0, %s207
      %s225 = sphi 0, %s225
      %s227 = sphi 0, %s225
      %s228 = sphi 0, %s227
      %s242 = sphi 0, %s228
      %s246 = sphi 0, %s246
      %s248 = sphi 0, %s246
      %s249 = sphi 0, %s248
      %s263 = sphi 0, %s249
      %s269 = sphi 0, %s271
      %s272 = sphi 0, %s269
      %s273 = sphi 0, %s272
      %s289 = sphi 0, %s273
      %s295 = sphi 0, %s297
      %s298 = sphi 0, %s295
      %s299 = sphi 0, %s298
      %s315 = sphi 0, %s299
    $region4: #{_lambda_.1} parent=1 // loop_header_branch
      %27 = sbr.rel (%p25) target = $region8
    $region5: #{_lambda_.1} parent=1 // loop_body
      %s29 = ssub.s32 %s24, 1
      %s30 = ssub.s32 %s24, 2
      %s31 = sadd.s32 %s24, 1
      %s32 = ssub.s32 %s24, %s31
      %p33 = scmp.eq.s32.totalorder %s32, 0
      %s35 = sadd.s32 %s34, 1
      %s36 = scalar_select %p33, %s34, %s35
      %p39 = pneg %p33
      %p40 = scmp.eq.s32.totalorder %s24, 1
      %p41 = por %p39, %p40
      %p42 = scmp.ne.s32.totalorder %s34, %s37
      %p43 = scmp.eq.s32.totalorder %s24, 0
      %p44 = por %p42, %p43
      %p45 = scmp.ne.s32.totalorder %s34, %s37
      %p46 = scmp.eq.s32.totalorder %s29, 1
      %p47 = por %p45, %p46
      %p48 = scmp.ne.s32.totalorder %s37, %s38
      %p49 = scmp.eq.s32.totalorder %s29, 0
      %p50 = por %p48, %p49
      %p51 = scmp.ne.s32.totalorder %s37, %s38
      %p52 = scmp.eq.s32.totalorder %s30, 1
      %p53 = por %p51, %p52
      %p55 = scmp.ne.s32.totalorder %s38, %s54
      %p56 = scmp.eq.s32.totalorder %s30, 0
      %p57 = por %p55, %p56
      %s58 = ssub.s32 %s24, %s31
      %p59 = scmp.eq.s32.totalorder %s58, 0
      %s61 = sadd.s32 %s60, 1
      %s62 = scalar_select %p59, %s60, %s61
      %p65 = pneg %p59
      %p66 = scmp.eq.s32.totalorder %s24, 1
      %p67 = por %p65, %p66
      %p68 = scmp.ne.s32.totalorder %s60, %s63
      %p69 = scmp.eq.s32.totalorder %s24, 0
      %p70 = por %p68, %p69
      %p71 = scmp.ne.s32.totalorder %s60, %s63
      %p72 = scmp.eq.s32.totalorder %s29, 1
      %p73 = por %p71, %p72
      %p74 = scmp.ne.s32.totalorder %s63, %s64
      %p75 = scmp.eq.s32.totalorder %s29, 0
      %p76 = por %p74, %p75
      %p77 = scmp.ne.s32.totalorder %s63, %s64
      %p78 = scmp.eq.s32.totalorder %s30, 1
      %p79 = por %p77, %p78
      %p81 = scmp.ne.s32.totalorder %s64, %s80
      %p82 = scmp.eq.s32.totalorder %s30, 0
      %p83 = por %p81, %p82
      %s84 = ssub.s32 %s24, %s31
      %p85 = scmp.eq.s32.totalorder %s84, 0
      %s87 = sadd.s32 %s86, 1
      %s88 = scalar_select %p85, %s86, %s87
      %p91 = pneg %p85
      %p92 = scmp.eq.s32.totalorder %s24, 1
      %p93 = por %p91, %p92
      %p94 = scmp.ne.s32.totalorder %s86, %s89
      %p95 = scmp.eq.s32.totalorder %s24, 0
      %p96 = por %p94, %p95
      %p97 = scmp.ne.s32.totalorder %s86, %s89
      %p98 = scmp.eq.s32.totalorder %s29, 1
      %p99 = por %p97, %p98
      %p100 = scmp.ne.s32.totalorder %s89, %s90
      %p101 = scmp.eq.s32.totalorder %s29, 0
      %p102 = por %p100, %p101
      %p103 = scmp.ne.s32.totalorder %s89, %s90
      %p104 = scmp.eq.s32.totalorder %s30, 1
      %p105 = por %p103, %p104
      %p107 = scmp.ne.s32.totalorder %s90, %s106
      %p108 = scmp.eq.s32.totalorder %s30, 0
      %p109 = por %p107, %p108
      %s110 = ssub.s32 %s24, %s31
      %p111 = scmp.eq.s32.totalorder %s110, 0
      %s113 = sadd.s32 %s112, 1
      %s114 = scalar_select %p111, %s112, %s113
      %p117 = pneg %p111
      %p118 = scmp.eq.s32.totalorder %s24, 1
      %p119 = por %p117, %p118
      %p120 = scmp.ne.s32.totalorder %s112, %s115
      %p121 = scmp.eq.s32.totalorder %s24, 0
      %p122 = por %p120, %p121
      %p123 = scmp.ne.s32.totalorder %s112, %s115
      %p124 = scmp.eq.s32.totalorder %s29, 1
      %p125 = por %p123, %p124
      %p126 = scmp.ne.s32.totalorder %s115, %s116
      %p127 = scmp.eq.s32.totalorder %s29, 0
      %p128 = por %p126, %p127
      %p129 = scmp.ne.s32.totalorder %s115, %s116
      %p130 = scmp.eq.s32.totalorder %s30, 1
      %p131 = por %p129, %p130
      %p133 = scmp.ne.s32.totalorder %s116, %s132
      %p134 = scmp.eq.s32.totalorder %s30, 0
      %p135 = por %p133, %p134
      %s136 = ssub.s32 %s24, %s31
      %p137 = scmp.eq.s32.totalorder %s136, 0
      %s139 = sadd.s32 %s138, 1
      %s140 = scalar_select %p137, %s138, %s139
      %p143 = pneg %p137
      %p144 = scmp.eq.s32.totalorder %s24, 1
      %p145 = por %p143, %p144
      %p146 = scmp.ne.s32.totalorder %s138, %s141
      %p147 = scmp.eq.s32.totalorder %s24, 0
      %p148 = por %p146, %p147
      %p149 = scmp.ne.s32.totalorder %s138, %s141
      %p150 = scmp.eq.s32.totalorder %s29, 1
      %p151 = por %p149, %p150
      %p152 = scmp.ne.s32.totalorder %s141, %s142
      %p153 = scmp.eq.s32.totalorder %s29, 0
      %p154 = por %p152, %p153
      %p155 = scmp.ne.s32.totalorder %s141, %s142
      %p156 = scmp.eq.s32.totalorder %s30, 1
      %p157 = por %p155, %p156
      %p159 = scmp.ne.s32.totalorder %s142, %s158
      %p160 = scmp.eq.s32.totalorder %s30, 0
      %p161 = por %p159, %p160
      %s163 = sadd.s32 %s162, 1
      %p166 = scmp.eq.s32.totalorder %s24, 1
      %p167 = scmp.ne.s32.totalorder %s162, %s164
      %p168 = scmp.eq.s32.totalorder %s24, 0
      %p169 = por %p167, %p168
      %p170 = scmp.ne.s32.totalorder %s162, %s164
      %p171 = scmp.eq.s32.totalorder %s29, 1
      %p172 = por %p170, %p171
      %p173 = scmp.ne.s32.totalorder %s164, %s165
      %p174 = scmp.eq.s32.totalorder %s29, 0
      %p175 = por %p173, %p174
      %p176 = scmp.ne.s32.totalorder %s164, %s165
      %p177 = scmp.eq.s32.totalorder %s30, 1
      %p178 = por %p176, %p177
      %p180 = scmp.ne.s32.totalorder %s165, %s179
      %p181 = scmp.eq.s32.totalorder %s30, 0
      %p182 = por %p180, %p181
      %s184 = sadd.s32 %s183, 1
      %p187 = scmp.eq.s32.totalorder %s24, 1
      %p188 = scmp.ne.s32.totalorder %s183, %s185
      %p189 = scmp.eq.s32.totalorder %s24, 0
      %p190 = por %p188, %p189
      %p191 = scmp.ne.s32.totalorder %s183, %s185
      %p192 = scmp.eq.s32.totalorder %s29, 1
      %p193 = por %p191, %p192
      %p194 = scmp.ne.s32.totalorder %s185, %s186
      %p195 = scmp.eq.s32.totalorder %s29, 0
      %p196 = por %p194, %p195
      %p197 = scmp.ne.s32.totalorder %s185, %s186
      %p198 = scmp.eq.s32.totalorder %s30, 1
      %p199 = por %p197, %p198
      %p201 = scmp.ne.s32.totalorder %s186, %s200
      %p202 = scmp.eq.s32.totalorder %s30, 0
      %p203 = por %p201, %p202
      %s205 = sadd.s32 %s204, 1
      %p208 = scmp.eq.s32.totalorder %s24, 1
      %p209 = scmp.ne.s32.totalorder %s204, %s206
      %p210 = scmp.eq.s32.totalorder %s24, 0
      %p211 = por %p209, %p210
      %p212 = scmp.ne.s32.totalorder %s204, %s206
      %p213 = scmp.eq.s32.totalorder %s29, 1
      %p214 = por %p212, %p213
      %p215 = scmp.ne.s32.totalorder %s206, %s207
      %p216 = scmp.eq.s32.totalorder %s29, 0
      %p217 = por %p215, %p216
      %p218 = scmp.ne.s32.totalorder %s206, %s207
      %p219 = scmp.eq.s32.totalorder %s30, 1
      %p220 = por %p218, %p219
      %p222 = scmp.ne.s32.totalorder %s207, %s221
      %p223 = scmp.eq.s32.totalorder %s30, 0
      %p224 = por %p222, %p223
      %s226 = sadd.s32 %s225, 1
      %p229 = scmp.eq.s32.totalorder %s24, 1
      %p230 = scmp.ne.s32.totalorder %s225, %s227
      %p231 = scmp.eq.s32.totalorder %s24, 0
      %p232 = por %p230, %p231
      %p233 = scmp.ne.s32.totalorder %s225, %s227
      %p234 = scmp.eq.s32.totalorder %s29, 1
      %p235 = por %p233, %p234
      %p236 = scmp.ne.s32.totalorder %s227, %s228
      %p237 = scmp.eq.s32.totalorder %s29, 0
      %p238 = por %p236, %p237
      %p239 = scmp.ne.s32.totalorder %s227, %s228
      %p240 = scmp.eq.s32.totalorder %s30, 1
      %p241 = por %p239, %p240
      %p243 = scmp.ne.s32.totalorder %s228, %s242
      %p244 = scmp.eq.s32.totalorder %s30, 0
      %p245 = por %p243, %p244
      %s247 = sadd.s32 %s246, 1
      %p250 = scmp.eq.s32.totalorder %s24, 1
      %p251 = scmp.ne.s32.totalorder %s246, %s248
      %p252 = scmp.eq.s32.totalorder %s24, 0
      %p253 = por %p251, %p252
      %p254 = scmp.ne.s32.totalorder %s246, %s248
      %p255 = scmp.eq.s32.totalorder %s29, 1
      %p256 = por %p254, %p255
      %p257 = scmp.ne.s32.totalorder %s248, %s249
      %p258 = scmp.eq.s32.totalorder %s29, 0
      %p259 = por %p257, %p258
      %p260 = scmp.ne.s32.totalorder %s248, %s249
      %p261 = scmp.eq.s32.totalorder %s30, 1
      %p262 = por %p260, %p261
      %p264 = scmp.ne.s32.totalorder %s249, %s263
      %p265 = scmp.eq.s32.totalorder %s30, 0
      %p266 = por %p264, %p265
      %s267 = ssub.s32 %s24, %s31
      %p268 = scmp.eq.s32.totalorder %s267, 0
      %s270 = sadd.s32 %s269, 1
      %s271 = scalar_select %p268, %s269, %s270
      %p274 = pneg %p268
      %p275 = scmp.eq.s32.totalorder %s24, 1
      %p276 = por %p274, %p275
      %p277 = scmp.ne.s32.totalorder %s269, %s272
      %p278 = scmp.eq.s32.totalorder %s24, 0
      %p279 = por %p277, %p278
      %p280 = scmp.ne.s32.totalorder %s269, %s272
      %p281 = scmp.eq.s32.totalorder %s29, 1
      %p282 = por %p280, %p281
      %p283 = scmp.ne.s32.totalorder %s272, %s273
      %p284 = scmp.eq.s32.totalorder %s29, 0
      %p285 = por %p283, %p284
      %p286 = scmp.ne.s32.totalorder %s272, %s273
      %p287 = scmp.eq.s32.totalorder %s30, 1
      %p288 = por %p286, %p287
      %p290 = scmp.ne.s32.totalorder %s273, %s289
      %p291 = scmp.eq.s32.totalorder %s30, 0
      %p292 = por %p290, %p291
      %s293 = ssub.s32 %s24, %s31
      %p294 = scmp.eq.s32.totalorder %s293, 0
      %s296 = sadd.s32 %s295, 1
      %s297 = scalar_select %p294, %s295, %s296
      %p300 = pneg %p294
      %p301 = scmp.eq.s32.totalorder %s24, 1
      %p302 = por %p300, %p301
      %p303 = scmp.ne.s32.totalorder %s295, %s298
      %p304 = scmp.eq.s32.totalorder %s24, 0
      %p305 = por %p303, %p304
      %p306 = scmp.ne.s32.totalorder %s295, %s298
      %p307 = scmp.eq.s32.totalorder %s29, 1
      %p308 = por %p306, %p307
      %p309 = scmp.ne.s32.totalorder %s298, %s299
      %p310 = scmp.eq.s32.totalorder %s29, 0
      %p311 = por %p309, %p310
      %p312 = scmp.ne.s32.totalorder %s298, %s299
      %p313 = scmp.eq.s32.totalorder %s30, 1
      %p314 = por %p312, %p313
      %p316 = scmp.ne.s32.totalorder %s299, %s315
      %p317 = scmp.eq.s32.totalorder %s30, 0
      %p318 = por %p316, %p317
      %p319 = scmp.le.s32.totalorder 1, %s24
      %p320 = scmp.lt.s32.totalorder %s24, 3
      %p321 = pnand %p319, %p320
      %p322 = pneg %p321
      // Predicated region
      $region9: #{_lambda_.1} parent=5 // pred_check
        _
      $region10: #{_lambda_.1} parent=5 // pred_check_branch
        %324 = sbr.rel (%p321) target = $region12
      $region11: #{_lambda_.1} parent=5 // pred_region
        %s325 = ssub.s32 %s24, 1
        // Predicated region
        $region13: #{_lambda_.1} parent=11 // pred_check
          %p326 = pneg %p175
        $region14: #{_lambda_.1} parent=11 // pred_check_branch
          %328 = sbr.rel (%p326) target = $region16
        $region15: #{_lambda_.1} parent=11 // pred_region
          _
        $region16: #{_lambda_.1} parent=11 // pred_fallthru
          _
        // Predicated region
        $region17: #{_lambda_.1} parent=11 // pred_check
          %p329 = pneg %p196
        $region18: #{_lambda_.1} parent=11 // pred_check_branch
          %331 = sbr.rel (%p329) target = $region20
        $region19: #{_lambda_.1} parent=11 // pred_region
          _
        $region20: #{_lambda_.1} parent=11 // pred_fallthru
          _
        // Predicated region
        $region21: #{_lambda_.1} parent=11 // pred_check
          %p332 = pneg %p217
        $region22: #{_lambda_.1} parent=11 // pred_check_branch
          %334 = sbr.rel (%p332) target = $region24
        $region23: #{_lambda_.1} parent=11 // pred_region
          _
        $region24: #{_lambda_.1} parent=11 // pred_fallthru
          _
        // Predicated region
        $region25: #{_lambda_.1} parent=11 // pred_check
          %p335 = pneg %p238
        $region26: #{_lambda_.1} parent=11 // pred_check_branch
          %337 = sbr.rel (%p335) target = $region28
        $region27: #{_lambda_.1} parent=11 // pred_region
          _
        $region28: #{_lambda_.1} parent=11 // pred_fallthru
          _
        // Predicated region
        $region29: #{_lambda_.1} parent=11 // pred_check
          %p338 = pneg %p259
        $region30: #{_lambda_.1} parent=11 // pred_check_branch
          %340 = sbr.rel (%p338) target = $region32
        $region31: #{_lambda_.1} parent=11 // pred_region
          _
        $region32: #{_lambda_.1} parent=11 // pred_fallthru
          _
      $region12: #{_lambda_.1} parent=5 // pred_fallthru
        _
      %p341 = scmp.lt.s32.totalorder %s24, 2
      // Predicated region
      $region33: #{_lambda_.1} parent=5 // pred_check
        %p342 = pneg %p341
      $region34: #{_lambda_.1} parent=5 // pred_check_branch
        %344 = sbr.rel (%p342) target = $region36
      $region35: #{_lambda_.1} parent=5 // pred_region
        // Predicated region
        $region37: #{_lambda_.1} parent=35 // pred_check
          %p345 = pneg %p44
        $region38: #{_lambda_.1} parent=35 // pred_check_branch
          %347 = sbr.rel (%p345) target = $region40
        $region39: #{_lambda_.1} parent=35 // pred_region
          %p348 = scmp.lt.s32.totalorder %s24, 1
          %s349 = scalar_select %p348, %s24, 1
          %s350 = smul.addr %s349, 8
          %s351 = scalar_lea.vmem %s0, %s350
        $region40: #{_lambda_.1} parent=35 // pred_fallthru
          _
        // Predicated region
        $region41: #{_lambda_.1} parent=35 // pred_check
          %p352 = pneg %p70
        $region42: #{_lambda_.1} parent=35 // pred_check_branch
          %354 = sbr.rel (%p352) target = $region44
        $region43: #{_lambda_.1} parent=35 // pred_region
          %p355 = scmp.lt.s32.totalorder %s24, 1
          %s356 = scalar_select %p355, %s24, 1
          %s357 = smul.addr %s356, 8
          %s358 = scalar_lea.vmem %s1, %s357
        $region44: #{_lambda_.1} parent=35 // pred_fallthru
          _
        // Predicated region
        $region45: #{_lambda_.1} parent=35 // pred_check
          %p359 = pneg %p96
        $region46: #{_lambda_.1} parent=35 // pred_check_branch
          %361 = sbr.rel (%p359) target = $region48
        $region47: #{_lambda_.1} parent=35 // pred_region
          %s362 = smul.u32 8, %s24
          %p363 = scmp.lt.s32.totalorder %s362, 15
          %s364 = scalar_select %p363, %s362, 15
          %s365 = smul.addr %s364, 4
          %s366 = scalar_lea.vmem %s2, %s365
          %s367 = smul.u32 8, %s24
        $region48: #{_lambda_.1} parent=35 // pred_fallthru
          _
        // Predicated region
        $region49: #{_lambda_.1} parent=35 // pred_check
          %p368 = pneg %p122
        $region50: #{_lambda_.1} parent=35 // pred_check_branch
          %370 = sbr.rel (%p368) target = $region52
        $region51: #{_lambda_.1} parent=35 // pred_region
          %s371 = smul.u32 8, %s24
          %p372 = scmp.lt.s32.totalorder %s371, 15
          %s373 = scalar_select %p372, %s371, 15
          %s374 = smul.addr %s373, 4
          %s375 = scalar_lea.vmem %s3, %s374
          %s376 = smul.u32 8, %s24
        $region52: #{_lambda_.1} parent=35 // pred_fallthru
          _
        // Predicated region
        $region53: #{_lambda_.1} parent=35 // pred_check
          %p377 = pneg %p148
        $region54: #{_lambda_.1} parent=35 // pred_check_branch
          %379 = sbr.rel (%p377) target = $region56
        $region55: #{_lambda_.1} parent=35 // pred_region
          %s380 = smul.u32 8, %s24
          %p381 = scmp.lt.s32.totalorder %s380, 15
          %s382 = scalar_select %p381, %s380, 15
          %s383 = smul.addr %s382, 8
          %s384 = scalar_lea.vmem %s4, %s383
          %s385 = smul.u32 8, %s24
        $region56: #{_lambda_.1} parent=35 // pred_fallthru
          _
      $region36: #{_lambda_.1} parent=5 // pred_fallthru
        _
      %p386 = scmp.le.s32.totalorder 1, %s24
      %p387 = scmp.lt.s32.totalorder %s24, 3
      %p388 = pnand %p386, %p387
      %p389 = pneg %p388
      // Predicated region
      $region57: #{_lambda_.1} parent=5 // pred_check
        _
      $region58: #{_lambda_.1} parent=5 // pred_check_branch
        %391 = sbr.rel (%p388) target = $region60
      $region59: #{_lambda_.1} parent=5 // pred_region
        %s392 = ssub.s32 %s24, 1
        %p393 = scmp.lt.s32.totalorder %s29, 1
        %s394 = scalar_select %p393, %s29, 1
        %s395 = smul.addr %s394, 8
        %s396 = scalar_lea.vmem %s0, %s395
        %p397 = pneg %p50
        %p398 = pneg %p47
        %p399 = scmp.lt.s32.totalorder %s29, 1
        %s400 = scalar_select %p399, %s29, 1
        %s401 = smul.addr %s400, 8
        %s402 = scalar_lea.vmem %s1, %s401
        %p403 = pneg %p76
        %p404 = pneg %p73
        %s405 = smul.u32 8, %s29
        %p406 = scmp.lt.s32.totalorder %s405, 15
        %s407 = scalar_select %p406, %s405, 15
        %s408 = smul.addr %s407, 4
        %s409 = scalar_lea.vmem %s2, %s408
        %p410 = pneg %p102
        %p411 = pneg %p99
        %s412 = smul.u32 8, %s29
        %p413 = scmp.lt.s32.totalorder %s412, 15
        %s414 = scalar_select %p413, %s412, 15
        %s415 = smul.addr %s414, 4
        %s416 = scalar_lea.vmem %s3, %s415
        %p417 = pneg %p128
        %p418 = pneg %p125
        %s419 = smul.u32 8, %s29
        %p420 = scmp.lt.s32.totalorder %s419, 15
        %s421 = scalar_select %p420, %s419, 15
        %s422 = smul.addr %s421, 8
        %s423 = scalar_lea.vmem %s4, %s422
        %p424 = pneg %p154
        %p425 = pneg %p151
        %p426 = pneg %p175
        %p427 = pneg %p172
        %p428 = pneg %p196
        %p429 = pneg %p193
        %p430 = pneg %p217
        %p431 = pneg %p214
        %p432 = pneg %p238
        %p433 = pneg %p235
        %p434 = pneg %p259
        %p435 = pneg %p256
        %p436 = pneg %p285
        %p437 = pneg %p282
        %s438 = sand.u32 %s272, 1
        %s439 = scalar_lea.sflag [#allocation3], %s438
        %s440 = sand.u32 %s272, 1
        %s441 = smul.addr %s440, 8
        %s442 = scalar_lea.vmem [#allocation2], %s441
        %p443 = pneg %p311
        %p444 = pneg %p308
        %s445 = sand.u32 %s298, 1
        %s446 = scalar_lea.sflag [#allocation5], %s445
        %s447 = sand.u32 %s298, 1
        %s448 = smul.addr %s447, 8
        %s449 = scalar_lea.vmem [#allocation4], %s448
        %p450 = scmp.lt.s32.totalorder %s29, 1
        %s451 = scalar_select %p450, %s29, 1
        %s452 = smul.addr %s451, 8
        %s453 = scalar_lea.vmem %s0, %s452
        %p454 = scmp.lt.s32.totalorder %s29, 1
        %s455 = scalar_select %p454, %s29, 1
        %s456 = smul.addr %s455, 8
        %s457 = scalar_lea.vmem %s1, %s456
        %s458 = smul.u32 8, %s29
        %p459 = scmp.lt.s32.totalorder %s458, 15
        %s460 = scalar_select %p459, %s458, 15
        %s461 = smul.addr %s460, 4
        %s462 = scalar_lea.vmem %s2, %s461
        %s463 = smul.u32 8, %s29
        %s464 = smul.u32 8, %s29
        %p465 = scmp.lt.s32.totalorder %s464, 15
        %s466 = scalar_select %p465, %s464, 15
        %s467 = smul.addr %s466, 4
        %s468 = scalar_lea.vmem %s3, %s467
        %s469 = smul.u32 8, %s29
        %s470 = smul.u32 8, %s29
        %p471 = scmp.lt.s32.totalorder %s470, 15
        %s472 = scalar_select %p471, %s470, 15
        %s473 = smul.addr %s472, 8
        %s474 = scalar_lea.vmem %s4, %s473
        %s475 = smul.u32 8, %s29
        %v476 = vld [vmem:[%s453] sm:$0xff]
        %v477 = vld [vmem:[%s457] sm:$0xff]
        %v478 = vld [vmem:[%s462] sm:$0xf]
        %v479 = vld [vmem:[%s462 + $0x4] sm:$0xf]
        %v480 = vld [vmem:[%s462 + $0x8] sm:$0xf]
        %v481 = vld [vmem:[%s462 + $0xc] sm:$0xf]
        %v482 = vld [vmem:[%s462 + $0x10] sm:$0xf]
        %v483 = vld [vmem:[%s462 + $0x14] sm:$0xf]
        %v484 = vld [vmem:[%s462 + $0x18] sm:$0xf]
        %v485 = vld [vmem:[%s462 + $0x1c] sm:$0xf]
        %v486 = vld [vmem:[%s5] sm:$0xff]
        %v487 = vld [vmem:[%s5 + $0x8] sm:$0xff]
        %v488 = vld [vmem:[%s5 + $0x10] sm:$0xff]
        %v489 = vld [vmem:[%s5 + $0x18] sm:$0xff]
        %v490 = vld [vmem:[%s5 + $0x20] sm:$0xff]
        %v491 = vld [vmem:[%s5 + $0x28] sm:$0xff]
        %v492 = vld [vmem:[%s5 + $0x30] sm:$0xff]
        %v493 = vld [vmem:[%s5 + $0x38] sm:$0xff]
        %v494 = vld [vmem:[%s5 + $0x40] sm:$0xff]
        %v495 = vld [vmem:[%s5 + $0x48] sm:$0xff]
        %v496 = vld [vmem:[%s5 + $0x50] sm:$0xff]
        %v497 = vld [vmem:[%s5 + $0x58] sm:$0xff]
        %v498 = vld [vmem:[%s5 + $0x60] sm:$0xff]
        %v499 = vld [vmem:[%s5 + $0x68] sm:$0xff]
        %v500 = vld [vmem:[%s5 + $0x70] sm:$0xff]
        %v501 = vld [vmem:[%s5 + $0x78] sm:$0xff]
        %v502 = vld [vmem:[%s5 + $0x80] sm:$0xff]
        %v503 = vld [vmem:[%s5 + $0x88] sm:$0xff]
        %v504 = vld [vmem:[%s5 + $0x90] sm:$0xff]
        %v505 = vld [vmem:[%s5 + $0x98] sm:$0xff]
        %v506 = vld [vmem:[%s5 + $0xa0] sm:$0xff]
        %v507 = vld [vmem:[%s5 + $0xa8] sm:$0xff]
        %v508 = vld [vmem:[%s5 + $0xb0] sm:$0xff]
        %v509 = vld [vmem:[%s5 + $0xb8] sm:$0xff]
        %v510 = vld [vmem:[%s5 + $0xc0] sm:$0xff]
        %v511 = vld [vmem:[%s5 + $0xc8] sm:$0xff]
        %v512 = vld [vmem:[%s5 + $0xd0] sm:$0xff]
        %v513 = vld [vmem:[%s5 + $0xd8] sm:$0xff]
        %v514 = vld [vmem:[%s5 + $0xe0] sm:$0xff]
        %v515 = vld [vmem:[%s5 + $0xe8] sm:$0xff]
        %v516 = vld [vmem:[%s5 + $0xf0] sm:$0xff]
        %v517 = vld [vmem:[%s5 + $0xf8] sm:$0xff]
        %v518 = vld [vmem:[%s5 + $0x100] sm:$0xff]
        %v519 = vld [vmem:[%s5 + $0x108] sm:$0xff]
        %v520 = vld [vmem:[%s5 + $0x110] sm:$0xff]
        %v521 = vld [vmem:[%s5 + $0x118] sm:$0xff]
        %v522 = vld [vmem:[%s5 + $0x120] sm:$0xff]
        %v523 = vld [vmem:[%s5 + $0x128] sm:$0xff]
        %v524 = vld [vmem:[%s5 + $0x130] sm:$0xff]
        %v525 = vld [vmem:[%s5 + $0x138] sm:$0xff]
        %v526 = vld [vmem:[%s5 + $0x140] sm:$0xff]
        %v527 = vld [vmem:[%s5 + $0x148] sm:$0xff]
        %v528 = vld [vmem:[%s5 + $0x150] sm:$0xff]
        %v529 = vld [vmem:[%s5 + $0x158] sm:$0xff]
        %v530 = vld [vmem:[%s5 + $0x160] sm:$0xff]
        %v531 = vld [vmem:[%s5 + $0x168] sm:$0xff]
        %v532 = vld [vmem:[%s5 + $0x170] sm:$0xff]
        %v533 = vld [vmem:[%s5 + $0x178] sm:$0xff]
        %534 = vmatpush.msra.mxu0 %v531
        %535 = vmatpush.msra.mxu0 %v528
        %536 = vmatpush.msra.mxu0 %v525
        %537 = vmatpush.msra.mxu0 %v522
        %538 = vmatpush.msra.mxu0 %v519
        %539 = vmatpush.msra.mxu0 %v516
        %540 = vmatpush.msra.mxu0 %v513
        %541 = vmatpush.msra.mxu0 %v510
        %542 = vmatpush.msra.mxu0 %v507
        %543 = vmatpush.msra.mxu0 %v504
        %544 = vmatpush.msra.mxu0 %v501
        %545 = vmatpush.msra.mxu0 %v498
        %546 = vmatpush.msra.mxu0 %v495
        %547 = vmatpush.msra.mxu0 %v492
        %548 = vmatpush.msra.mxu0 %v489
        %549 = vmatpush.msra.mxu0 %v486
        %550 = vmatmul.f32.gmra.mxu0 %v476
        %v551 = vpop.f32.mrf.mxu0
        %v552 = vadd.f32 0.0, %v551
        %553 = vdwg.mxu0
        %554 = vmatpush.msra.mxu0 %v532
        %555 = vmatpush.msra.mxu0 %v529
        %556 = vmatpush.msra.mxu0 %v526
        %557 = vmatpush.msra.mxu0 %v523
        %558 = vmatpush.msra.mxu0 %v520
        %559 = vmatpush.msra.mxu0 %v517
        %560 = vmatpush.msra.mxu0 %v514
        %561 = vmatpush.msra.mxu0 %v511
        %562 = vmatpush.msra.mxu0 %v508
        %563 = vmatpush.msra.mxu0 %v505
        %564 = vmatpush.msra.mxu0 %v502
        %565 = vmatpush.msra.mxu0 %v499
        %566 = vmatpush.msra.mxu0 %v496
        %567 = vmatpush.msra.mxu0 %v493
        %568 = vmatpush.msra.mxu0 %v490
        %569 = vmatpush.msra.mxu0 %v487
        %570 = vmatmul.f32.gmra.mxu0 %v476
        %v571 = vpop.f32.mrf.mxu0
        %v572 = vadd.f32 0.0, %v571
        %573 = vdwg.mxu0
        %574 = vmatpush.msra.mxu0 %v533
        %575 = vmatpush.msra.mxu0 %v530
        %576 = vmatpush.msra.mxu0 %v527
        %577 = vmatpush.msra.mxu0 %v524
        %578 = vmatpush.msra.mxu0 %v521
        %579 = vmatpush.msra.mxu0 %v518
        %580 = vmatpush.msra.mxu0 %v515
        %581 = vmatpush.msra.mxu0 %v512
        %582 = vmatpush.msra.mxu0 %v509
        %583 = vmatpush.msra.mxu0 %v506
        %584 = vmatpush.msra.mxu0 %v503
        %585 = vmatpush.msra.mxu0 %v500
        %586 = vmatpush.msra.mxu0 %v497
        %587 = vmatpush.msra.mxu0 %v494
        %588 = vmatpush.msra.mxu0 %v491
        %589 = vmatpush.msra.mxu0 %v488
        %590 = vmatmul.f32.gmra.mxu0 %v476
        %v591 = vpop.f32.mrf.mxu0
        %v592 = vadd.f32 0.0, %v591
        %593 = vdwg.mxu0
        %v594 = vunpack.c.l.bf16 %v478
        %v595 = vunpack.c.l.bf16 %v479
        %v596 = vunpack.c.l.bf16 %v480
        %v597 = vunpack.c.l.bf16 %v481
        %v598 = vunpack.c.l.bf16 %v482
        %v599 = vunpack.c.l.bf16 %v483
        %v600 = vunpack.c.l.bf16 %v484
        %v601 = vunpack.c.l.bf16 %v485
        %v602 = vrot.slane %v594, 4
        %v603 = vadd.f32 %v594, %v602
        %v604 = vrot.slane %v603, 2
        %v605 = vadd.f32 %v603, %v604
        %v606 = vrot.slane %v605, 1
        %v607 = vadd.f32 %v605, %v606
        %v608 = vrot.slane %v595, 4
        %v609 = vadd.f32 %v595, %v608
        %v610 = vrot.slane %v609, 2
        %v611 = vadd.f32 %v609, %v610
        %v612 = vrot.slane %v611, 1
        %v613 = vadd.f32 %v611, %v612
        %v614 = vrot.slane %v596, 4
        %v615 = vadd.f32 %v596, %v614
        %v616 = vrot.slane %v615, 2
        %v617 = vadd.f32 %v615, %v616
        %v618 = vrot.slane %v617, 1
        %v619 = vadd.f32 %v617, %v618
        %v620 = vrot.slane %v597, 4
        %v621 = vadd.f32 %v597, %v620
        %v622 = vrot.slane %v621, 2
        %v623 = vadd.f32 %v621, %v622
        %v624 = vrot.slane %v623, 1
        %v625 = vadd.f32 %v623, %v624
        %v626 = vrot.slane %v598, 4
        %v627 = vadd.f32 %v598, %v626
        %v628 = vrot.slane %v627, 2
        %v629 = vadd.f32 %v627, %v628
        %v630 = vrot.slane %v629, 1
        %v631 = vadd.f32 %v629, %v630
        %v632 = vrot.slane %v599, 4
        %v633 = vadd.f32 %v599, %v632
        %v634 = vrot.slane %v633, 2
        %v635 = vadd.f32 %v633, %v634
        %v636 = vrot.slane %v635, 1
        %v637 = vadd.f32 %v635, %v636
        %v638 = vrot.slane %v600, 4
        %v639 = vadd.f32 %v600, %v638
        %v640 = vrot.slane %v639, 2
        %v641 = vadd.f32 %v639, %v640
        %v642 = vrot.slane %v641, 1
        %v643 = vadd.f32 %v641, %v642
        %v644 = vrot.slane %v601, 4
        %v645 = vadd.f32 %v601, %v644
        %v646 = vrot.slane %v645, 2
        %v647 = vadd.f32 %v645, %v646
        %v648 = vrot.slane %v647, 1
        %v649 = vadd.f32 %v647, %v648
        %v650 = vrcp.pop 8.0
        %v651 = vmul.f32 8.0, %v650
        %v652 = vsub.f32 1.0, %v651
        %v653 = vmul.f32 %v650, %v652
        %v654 = vadd.f32 %v650, %v653
        %vm655 = vweird.f32 %v650
        %v656 = vsel %vm655, %v650, %v654
        %v657 = vmul.f32 %v607, %v656
        %v658 = vmul.f32 %v613, %v656
        %v659 = vmul.f32 %v619, %v656
        %v660 = vmul.f32 %v625, %v656
        %v661 = vmul.f32 %v631, %v656
        %v662 = vmul.f32 %v637, %v656
        %v663 = vmul.f32 %v643, %v656
        %v664 = vmul.f32 %v649, %v656
        %v665 = vld [vmem:[%s6] sm:$0xff]
        %v666 = vld [vmem:[%s6 + $0x8] sm:$0xff]
        %v667 = vld [vmem:[%s6 + $0x10] sm:$0xff]
        %v668 = vld [vmem:[%s6 + $0x18] sm:$0xff]
        %v669 = vld [vmem:[%s6 + $0x20] sm:$0xff]
        %v670 = vld [vmem:[%s6 + $0x28] sm:$0xff]
        %v671 = vld [vmem:[%s6 + $0x30] sm:$0xff]
        %v672 = vld [vmem:[%s6 + $0x38] sm:$0xff]
        %v673 = vld [vmem:[%s6 + $0x40] sm:$0xff]
        %v674 = vld [vmem:[%s6 + $0x48] sm:$0xff]
        %v675 = vld [vmem:[%s6 + $0x50] sm:$0xff]
        %v676 = vld [vmem:[%s6 + $0x58] sm:$0xff]
        %v677 = vld [vmem:[%s6 + $0x60] sm:$0xff]
        %v678 = vld [vmem:[%s6 + $0x68] sm:$0xff]
        %v679 = vld [vmem:[%s6 + $0x70] sm:$0xff]
        %v680 = vld [vmem:[%s6 + $0x78] sm:$0xff]
        %v681 = vld [vmem:[%s6 + $0x80] sm:$0xff]
        %v682 = vld [vmem:[%s6 + $0x88] sm:$0xff]
        %v683 = vld [vmem:[%s6 + $0x90] sm:$0xff]
        %v684 = vld [vmem:[%s6 + $0x98] sm:$0xff]
        %v685 = vld [vmem:[%s6 + $0xa0] sm:$0xff]
        %v686 = vld [vmem:[%s6 + $0xa8] sm:$0xff]
        %v687 = vld [vmem:[%s6 + $0xb0] sm:$0xff]
        %v688 = vld [vmem:[%s6 + $0xb8] sm:$0xff]
        %v689 = vld [vmem:[%s6 + $0xc0] sm:$0xff]
        %v690 = vld [vmem:[%s6 + $0xc8] sm:$0xff]
        %v691 = vld [vmem:[%s6 + $0xd0] sm:$0xff]
        %v692 = vld [vmem:[%s6 + $0xd8] sm:$0xff]
        %v693 = vld [vmem:[%s6 + $0xe0] sm:$0xff]
        %v694 = vld [vmem:[%s6 + $0xe8] sm:$0xff]
        %v695 = vld [vmem:[%s6 + $0xf0] sm:$0xff]
        %v696 = vld [vmem:[%s6 + $0xf8] sm:$0xff]
        %vm705 = vcmask 1041409
        %v706 = vsel %vm705, %v658, %v657
        %vm707 = vcmask 1042434
        %v708 = vsel %vm707, %v659, %v706
        %vm709 = vcmask 1043459
        %v710 = vsel %vm709, %v660, %v708
        %vm711 = vcmask 1044484
        %v712 = vsel %vm711, %v661, %v710
        %vm713 = vcmask 1045509
        %v714 = vsel %vm713, %v662, %v712
        %vm715 = vcmask 1046534
        %v716 = vsel %vm715, %v663, %v714
        %vm717 = vcmask 1047559
        %v718 = vsel %vm717, %v664, %v716
        %720 = vmatpush.msra.mxu0 %v695
        %721 = vmatpush.msra.mxu0 %v693
        %722 = vmatpush.msra.mxu0 %v691
        %723 = vmatpush.msra.mxu0 %v689
        %724 = vmatpush.msra.mxu0 %v687
        %725 = vmatpush.msra.mxu0 %v685
        %726 = vmatpush.msra.mxu0 %v683
        %727 = vmatpush.msra.mxu0 %v681
        %728 = vmatpush.msra.mxu0 %v679
        %729 = vmatpush.msra.mxu0 %v677
        %730 = vmatpush.msra.mxu0 %v675
        %731 = vmatpush.msra.mxu0 %v673
        %732 = vmatpush.msra.mxu0 %v671
        %733 = vmatpush.msra.mxu0 %v669
        %734 = vmatpush.msra.mxu0 %v667
        %735 = vmatpush.msra.mxu0 %v665
        %736 = vmatmul.f32.gmra.mxu0 %v718
        %v737 = vpop.f32.mrf.mxu0
        %v738 = vadd.f32 0.0, %v737
        %739 = vdwg.mxu0
        %740 = vmatpush.msra.mxu0 %v696
        %741 = vmatpush.msra.mxu0 %v694
        %742 = vmatpush.msra.mxu0 %v692
        %743 = vmatpush.msra.mxu0 %v690
        %744 = vmatpush.msra.mxu0 %v688
        %745 = vmatpush.msra.mxu0 %v686
        %746 = vmatpush.msra.mxu0 %v684
        %747 = vmatpush.msra.mxu0 %v682
        %748 = vmatpush.msra.mxu0 %v680
        %749 = vmatpush.msra.mxu0 %v678
        %750 = vmatpush.msra.mxu0 %v676
        %751 = vmatpush.msra.mxu0 %v674
        %752 = vmatpush.msra.mxu0 %v672
        %753 = vmatpush.msra.mxu0 %v670
        %754 = vmatpush.msra.mxu0 %v668
        %755 = vmatpush.msra.mxu0 %v666
        %756 = vmatmul.f32.gmra.mxu0 %v718
        %v757 = vpop.f32.mrf.mxu0
        %v758 = vadd.f32 0.0, %v757
        %759 = vdwg.mxu0
        %v760 = vadd.f32 %v552, %v738
        %v761 = vadd.f32 %v572, %v758
        %v762 = vld [vmem:[%s7] sm:$0x3]
        %v764 = vperm.slane %v762, 0
        %v765 = vperm.slane %v762, 1
        %v768 = vadd.f32 %v760, %v764
        %v769 = vadd.f32 %v761, %v765
        %v770 = vxor.u32 %v768, 2147483648
        %v771 = vxor.u32 %v769, 2147483648
        %v772 = vmul.f32 %v770, 1.442695
        %v773 = vpow.pop %v772
        %v774 = vmul.f32 %v771, 1.442695
        %v775 = vpow.pop %v774
        %v776 = vadd.f32 %v773, 1.0
        %v777 = vadd.f32 %v775, 1.0
        %v778 = vrcp.pop %v776
        %v779 = vmul.f32 %v776, %v778
        %v780 = vsub.f32 1.0, %v779
        %v781 = vmul.f32 %v778, %v780
        %v782 = vadd.f32 %v778, %v781
        %vm783 = vweird.f32 %v776
        %vm784 = vweird.f32 %v778
        %vm785 = vmor %vm783, %vm784
        %v786 = vsel %vm785, %v778, %v782
        %v787 = vand.u32 2147483647, %v776
        %vm788 = vcmp.eq.f32.partialorder %v787, 8.507059e+37
        %v789 = vand.u32 %v776, 2147483648
        %v790 = vor.u32 1.1754944e-38, %v789
        %v791 = vsel %vm788, %v790, %v786
        %v792 = vmul.f32 1.0, %v791
        %v793 = vrcp.pop %v777
        %v794 = vmul.f32 %v777, %v793
        %v795 = vsub.f32 1.0, %v794
        %v796 = vmul.f32 %v793, %v795
        %v797 = vadd.f32 %v793, %v796
        %vm798 = vweird.f32 %v777
        %vm799 = vweird.f32 %v793
        %vm800 = vmor %vm798, %vm799
        %v801 = vsel %vm800, %v793, %v797
        %v802 = vand.u32 2147483647, %v777
        %vm803 = vcmp.eq.f32.partialorder %v802, 8.507059e+37
        %v804 = vand.u32 %v777, 2147483648
        %v805 = vor.u32 1.1754944e-38, %v804
        %v806 = vsel %vm803, %v805, %v801
        %v807 = vmul.f32 1.0, %v806
        %v808 = vld [vmem:[%s8] sm:$0xf]
        %v809 = vld [vmem:[%s8 + $0x4] sm:$0xf]
        %v810 = vld [vmem:[%s8 + $0x8] sm:$0xf]
        %v811 = vld [vmem:[%s8 + $0xc] sm:$0xf]
        %v812 = vld [vmem:[%s8 + $0x10] sm:$0xf]
        %v813 = vld [vmem:[%s8 + $0x14] sm:$0xf]
        %v814 = vld [vmem:[%s8 + $0x18] sm:$0xf]
        %v815 = vld [vmem:[%s8 + $0x1c] sm:$0xf]
        %v816 = vld [vmem:[%s8 + $0x20] sm:$0xf]
        %v817 = vld [vmem:[%s8 + $0x24] sm:$0xf]
        %v818 = vld [vmem:[%s8 + $0x28] sm:$0xf]
        %v819 = vld [vmem:[%s8 + $0x2c] sm:$0xf]
        %v820 = vld [vmem:[%s8 + $0x30] sm:$0xf]
        %v821 = vld [vmem:[%s8 + $0x34] sm:$0xf]
        %v822 = vld [vmem:[%s8 + $0x38] sm:$0xf]
        %v823 = vld [vmem:[%s8 + $0x3c] sm:$0xf]
        %v832 = vunpack.c.l.b16 %v478
        %v833 = vunpack.c.l.b16 %v479
        %v834 = vunpack.c.l.b16 %v480
        %v835 = vunpack.c.l.b16 %v481
        %v836 = vunpack.c.l.b16 %v482
        %v837 = vunpack.c.l.b16 %v483
        %v838 = vunpack.c.l.b16 %v484
        %v839 = vunpack.c.l.b16 %v485
        %v840 = vpack.c.b16 %v833, %v832
        %v841 = vpack.c.b16 %v835, %v834
        %v842 = vpack.c.b16 %v837, %v836
        %v843 = vpack.c.b16 %v839, %v838
        %v864 = vunpack.c.l.b16 %v808
        %v865 = vunpack.c.l.b16 %v809
        %v866 = vunpack.c.l.b16 %v810
        %v867 = vunpack.c.l.b16 %v811
        %v868 = vunpack.c.l.b16 %v812
        %v869 = vunpack.c.l.b16 %v813
        %v870 = vunpack.c.l.b16 %v814
        %v871 = vunpack.c.l.b16 %v815
        %v872 = vunpack.c.l.b16 %v816
        %v873 = vunpack.c.l.b16 %v817
        %v874 = vunpack.c.l.b16 %v818
        %v875 = vunpack.c.l.b16 %v819
        %v876 = vunpack.c.l.b16 %v820
        %v877 = vunpack.c.l.b16 %v821
        %v878 = vunpack.c.l.b16 %v822
        %v879 = vunpack.c.l.b16 %v823
        %v880 = vpack.c.b16 %v865, %v864
        %v881 = vpack.c.b16 %v867, %v866
        %v882 = vpack.c.b16 %v869, %v868
        %v883 = vpack.c.b16 %v871, %v870
        %v884 = vpack.c.b16 %v873, %v872
        %v885 = vpack.c.b16 %v875, %v874
        %v886 = vpack.c.b16 %v877, %v876
        %v887 = vpack.c.b16 %v879, %v878
        %896 = vmatpush.bf16.msra.mxu0 %v887
        %897 = vmatpush.bf16.msra.mxu0 %v886
        %898 = vmatpush.bf16.msra.mxu0 %v885
        %899 = vmatpush.bf16.msra.mxu0 %v884
        %900 = vmatpush.bf16.msra.mxu0 %v883
        %901 = vmatpush.bf16.msra.mxu0 %v882
        %902 = vmatpush.bf16.msra.mxu0 %v881
        %903 = vmatpush.bf16.msra.mxu0 %v880
        %904 = vmatmul.bf16.gmra.mxu0 %v840
        %v905 = vpop.f32.mrf.mxu0
        %v906 = vadd.f32 0.0, %v905
        %v907 = vpop.f32.mrf.mxu0
        %v908 = vadd.f32 0.0, %v907
        %909 = vmatmul.bf16.gmra.mxu0 %v841
        %v910 = vpop.f32.mrf.mxu0
        %v911 = vadd.f32 0.0, %v910
        %v912 = vpop.f32.mrf.mxu0
        %v913 = vadd.f32 0.0, %v912
        %914 = vmatmul.bf16.gmra.mxu0 %v842
        %v915 = vpop.f32.mrf.mxu0
        %v916 = vadd.f32 0.0, %v915
        %v917 = vpop.f32.mrf.mxu0
        %v918 = vadd.f32 0.0, %v917
        %919 = vmatmul.bf16.gmra.mxu0 %v843
        %v920 = vpop.f32.mrf.mxu0
        %v921 = vadd.f32 0.0, %v920
        %v922 = vpop.f32.mrf.mxu0
        %v923 = vadd.f32 0.0, %v922
        %924 = vdwg.mxu0
        %v926 = vrot.slane %v592, 1
        %v927 = vrot.slane %v592, 2
        %v928 = vrot.slane %v592, 3
        %v929 = vrot.slane %v592, 4
        %v930 = vrot.slane %v592, 5
        %v931 = vrot.slane %v592, 6
        %v932 = vrot.slane %v592, 7
        %v933 = vperm.slane %v592, 0
        %v934 = vperm.slane %v926, 0
        %v935 = vperm.slane %v927, 0
        %v936 = vperm.slane %v928, 0
        %v937 = vperm.slane %v929, 0
        %v938 = vperm.slane %v930, 0
        %v939 = vperm.slane %v931, 0
        %v940 = vperm.slane %v932, 0
        %v949 = vadd.f32 %v933, %v906
        %v950 = vadd.f32 %v934, %v908
        %v951 = vadd.f32 %v935, %v911
        %v952 = vadd.f32 %v936, %v913
        %v953 = vadd.f32 %v937, %v916
        %v954 = vadd.f32 %v938, %v918
        %v955 = vadd.f32 %v939, %v921
        %v956 = vadd.f32 %v940, %v923
        %v957 = vld [vmem:[%s9] sm:$0x1]
        %v959 = vperm.slane %v957, 0
        %v961 = vadd.f32 %v949, %v959
        %v962 = vadd.f32 %v950, %v959
        %v963 = vadd.f32 %v951, %v959
        %v964 = vadd.f32 %v952, %v959
        %v965 = vadd.f32 %v953, %v959
        %v966 = vadd.f32 %v954, %v959
        %v967 = vadd.f32 %v955, %v959
        %v968 = vadd.f32 %v956, %v959
        %v969 = vxor.u32 %v961, 2147483648
        %v970 = vxor.u32 %v962, 2147483648
        %v971 = vxor.u32 %v963, 2147483648
        %v972 = vxor.u32 %v964, 2147483648
        %v973 = vxor.u32 %v965, 2147483648
        %v974 = vxor.u32 %v966, 2147483648
        %v975 = vxor.u32 %v967, 2147483648
        %v976 = vxor.u32 %v968, 2147483648
        %v977 = vmul.f32 %v969, 1.442695
        %v978 = vpow.pop %v977
        %v979 = vmul.f32 %v970, 1.442695
        %v980 = vpow.pop %v979
        %v981 = vmul.f32 %v971, 1.442695
        %v982 = vpow.pop %v981
        %v983 = vmul.f32 %v972, 1.442695
        %v984 = vpow.pop %v983
        %v985 = vmul.f32 %v973, 1.442695
        %v986 = vpow.pop %v985
        %v987 = vmul.f32 %v974, 1.442695
        %v988 = vpow.pop %v987
        %v989 = vmul.f32 %v975, 1.442695
        %v990 = vpow.pop %v989
        %v991 = vmul.f32 %v976, 1.442695
        %v992 = vpow.pop %v991
        %v993 = vadd.f32 %v978, 1.0
        %v994 = vadd.f32 %v980, 1.0
        %v995 = vadd.f32 %v982, 1.0
        %v996 = vadd.f32 %v984, 1.0
        %v997 = vadd.f32 %v986, 1.0
        %v998 = vadd.f32 %v988, 1.0
        %v999 = vadd.f32 %v990, 1.0
        %v1000 = vadd.f32 %v992, 1.0
        %v1001 = vrcp.pop %v993
        %v1002 = vmul.f32 %v993, %v1001
        %v1003 = vsub.f32 1.0, %v1002
        %v1004 = vmul.f32 %v1001, %v1003
        %v1005 = vadd.f32 %v1001, %v1004
        %vm1006 = vweird.f32 %v993
        %vm1007 = vweird.f32 %v1001
        %vm1008 = vmor %vm1006, %vm1007
        %v1009 = vsel %vm1008, %v1001, %v1005
        %v1010 = vand.u32 2147483647, %v993
        %vm1011 = vcmp.eq.f32.partialorder %v1010, 8.507059e+37
        %v1012 = vand.u32 %v993, 2147483648
        %v1013 = vor.u32 1.1754944e-38, %v1012
        %v1014 = vsel %vm1011, %v1013, %v1009
        %v1015 = vmul.f32 1.0, %v1014
        %v1016 = vrcp.pop %v994
        %v1017 = vmul.f32 %v994, %v1016
        %v1018 = vsub.f32 1.0, %v1017
        %v1019 = vmul.f32 %v1016, %v1018
        %v1020 = vadd.f32 %v1016, %v1019
        %vm1021 = vweird.f32 %v994
        %vm1022 = vweird.f32 %v1016
        %vm1023 = vmor %vm1021, %vm1022
        %v1024 = vsel %vm1023, %v1016, %v1020
        %v1025 = vand.u32 2147483647, %v994
        %vm1026 = vcmp.eq.f32.partialorder %v1025, 8.507059e+37
        %v1027 = vand.u32 %v994, 2147483648
        %v1028 = vor.u32 1.1754944e-38, %v1027
        %v1029 = vsel %vm1026, %v1028, %v1024
        %v1030 = vmul.f32 1.0, %v1029
        %v1031 = vrcp.pop %v995
        %v1032 = vmul.f32 %v995, %v1031
        %v1033 = vsub.f32 1.0, %v1032
        %v1034 = vmul.f32 %v1031, %v1033
        %v1035 = vadd.f32 %v1031, %v1034
        %vm1036 = vweird.f32 %v995
        %vm1037 = vweird.f32 %v1031
        %vm1038 = vmor %vm1036, %vm1037
        %v1039 = vsel %vm1038, %v1031, %v1035
        %v1040 = vand.u32 2147483647, %v995
        %vm1041 = vcmp.eq.f32.partialorder %v1040, 8.507059e+37
        %v1042 = vand.u32 %v995, 2147483648
        %v1043 = vor.u32 1.1754944e-38, %v1042
        %v1044 = vsel %vm1041, %v1043, %v1039
        %v1045 = vmul.f32 1.0, %v1044
        %v1046 = vrcp.pop %v996
        %v1047 = vmul.f32 %v996, %v1046
        %v1048 = vsub.f32 1.0, %v1047
        %v1049 = vmul.f32 %v1046, %v1048
        %v1050 = vadd.f32 %v1046, %v1049
        %vm1051 = vweird.f32 %v996
        %vm1052 = vweird.f32 %v1046
        %vm1053 = vmor %vm1051, %vm1052
        %v1054 = vsel %vm1053, %v1046, %v1050
        %v1055 = vand.u32 2147483647, %v996
        %vm1056 = vcmp.eq.f32.partialorder %v1055, 8.507059e+37
        %v1057 = vand.u32 %v996, 2147483648
        %v1058 = vor.u32 1.1754944e-38, %v1057
        %v1059 = vsel %vm1056, %v1058, %v1054
        %v1060 = vmul.f32 1.0, %v1059
        %v1061 = vrcp.pop %v997
        %v1062 = vmul.f32 %v997, %v1061
        %v1063 = vsub.f32 1.0, %v1062
        %v1064 = vmul.f32 %v1061, %v1063
        %v1065 = vadd.f32 %v1061, %v1064
        %vm1066 = vweird.f32 %v997
        %vm1067 = vweird.f32 %v1061
        %vm1068 = vmor %vm1066, %vm1067
        %v1069 = vsel %vm1068, %v1061, %v1065
        %v1070 = vand.u32 2147483647, %v997
        %vm1071 = vcmp.eq.f32.partialorder %v1070, 8.507059e+37
        %v1072 = vand.u32 %v997, 2147483648
        %v1073 = vor.u32 1.1754944e-38, %v1072
        %v1074 = vsel %vm1071, %v1073, %v1069
        %v1075 = vmul.f32 1.0, %v1074
        %v1076 = vrcp.pop %v998
        %v1077 = vmul.f32 %v998, %v1076
        %v1078 = vsub.f32 1.0, %v1077
        %v1079 = vmul.f32 %v1076, %v1078
        %v1080 = vadd.f32 %v1076, %v1079
        %vm1081 = vweird.f32 %v998
        %vm1082 = vweird.f32 %v1076
        %vm1083 = vmor %vm1081, %vm1082
        %v1084 = vsel %vm1083, %v1076, %v1080
        %v1085 = vand.u32 2147483647, %v998
        %vm1086 = vcmp.eq.f32.partialorder %v1085, 8.507059e+37
        %v1087 = vand.u32 %v998, 2147483648
        %v1088 = vor.u32 1.1754944e-38, %v1087
        %v1089 = vsel %vm1086, %v1088, %v1084
        %v1090 = vmul.f32 1.0, %v1089
        %v1091 = vrcp.pop %v999
        %v1092 = vmul.f32 %v999, %v1091
        %v1093 = vsub.f32 1.0, %v1092
        %v1094 = vmul.f32 %v1091, %v1093
        %v1095 = vadd.f32 %v1091, %v1094
        %vm1096 = vweird.f32 %v999
        %vm1097 = vweird.f32 %v1091
        %vm1098 = vmor %vm1096, %vm1097
        %v1099 = vsel %vm1098, %v1091, %v1095
        %v1100 = vand.u32 2147483647, %v999
        %vm1101 = vcmp.eq.f32.partialorder %v1100, 8.507059e+37
        %v1102 = vand.u32 %v999, 2147483648
        %v1103 = vor.u32 1.1754944e-38, %v1102
        %v1104 = vsel %vm1101, %v1103, %v1099
        %v1105 = vmul.f32 1.0, %v1104
        %v1106 = vrcp.pop %v1000
        %v1107 = vmul.f32 %v1000, %v1106
        %v1108 = vsub.f32 1.0, %v1107
        %v1109 = vmul.f32 %v1106, %v1108
        %v1110 = vadd.f32 %v1106, %v1109
        %vm1111 = vweird.f32 %v1000
        %vm1112 = vweird.f32 %v1106
        %vm1113 = vmor %vm1111, %vm1112
        %v1114 = vsel %vm1113, %v1106, %v1110
        %v1115 = vand.u32 2147483647, %v1000
        %vm1116 = vcmp.eq.f32.partialorder %v1115, 8.507059e+37
        %v1117 = vand.u32 %v1000, 2147483648
        %v1118 = vor.u32 1.1754944e-38, %v1117
        %v1119 = vsel %vm1116, %v1118, %v1114
        %v1120 = vmul.f32 1.0, %v1119
        %v1121 = vld [vmem:[%s474] sm:$0xff]
        %v1122 = vld [vmem:[%s474 + $0x8] sm:$0xff]
        %v1123 = vld [vmem:[%s474 + $0x10] sm:$0xff]
        %v1124 = vld [vmem:[%s474 + $0x18] sm:$0xff]
        %v1125 = vld [vmem:[%s474 + $0x20] sm:$0xff]
        %v1126 = vld [vmem:[%s474 + $0x28] sm:$0xff]
        %v1127 = vld [vmem:[%s474 + $0x30] sm:$0xff]
        %v1128 = vld [vmem:[%s474 + $0x38] sm:$0xff]
        %1130 = vset.pattern.permute.xlu0 0
        %1131 = vperm.xlu0 %1130, %v1121
        %v1132 = vpop.permute.xlu0 %1131
        %1135 = vset.pattern.permute.xlu0 0
        %1136 = vperm.xlu0 %1135, %v1122
        %v1137 = vpop.permute.xlu0 %1136
        %1140 = vset.pattern.permute.xlu0 0
        %1141 = vperm.xlu0 %1140, %v1123
        %v1142 = vpop.permute.xlu0 %1141
        %1145 = vset.pattern.permute.xlu0 0
        %1146 = vperm.xlu0 %1145, %v1124
        %v1147 = vpop.permute.xlu0 %1146
        %1150 = vset.pattern.permute.xlu0 0
        %1151 = vperm.xlu0 %1150, %v1125
        %v1152 = vpop.permute.xlu0 %1151
        %1155 = vset.pattern.permute.xlu0 0
        %1156 = vperm.xlu0 %1155, %v1126
        %v1157 = vpop.permute.xlu0 %1156
        %1160 = vset.pattern.permute.xlu0 0
        %1161 = vperm.xlu0 %1160, %v1127
        %v1162 = vpop.permute.xlu0 %1161
        %1165 = vset.pattern.permute.xlu0 0
        %1166 = vperm.xlu0 %1165, %v1128
        %v1167 = vpop.permute.xlu0 %1166
        %v1169 = vadd.f32 %v1015, %v1132
        %v1170 = vadd.f32 %v1030, %v1137
        %v1171 = vadd.f32 %v1045, %v1142
        %v1172 = vadd.f32 %v1060, %v1147
        %v1173 = vadd.f32 %v1075, %v1152
        %v1174 = vadd.f32 %v1090, %v1157
        %v1175 = vadd.f32 %v1105, %v1162
        %v1176 = vadd.f32 %v1120, %v1167
        %v1177 = vmul.f32 %v1169, 1.442695
        %v1178 = vpow.pop %v1177
        %v1179 = vmul.f32 %v1170, 1.442695
        %v1180 = vpow.pop %v1179
        %v1181 = vmul.f32 %v1171, 1.442695
        %v1182 = vpow.pop %v1181
        %v1183 = vmul.f32 %v1172, 1.442695
        %v1184 = vpow.pop %v1183
        %v1185 = vmul.f32 %v1173, 1.442695
        %v1186 = vpow.pop %v1185
        %v1187 = vmul.f32 %v1174, 1.442695
        %v1188 = vpow.pop %v1187
        %v1189 = vmul.f32 %v1175, 1.442695
        %v1190 = vpow.pop %v1189
        %v1191 = vmul.f32 %v1176, 1.442695
        %v1192 = vpow.pop %v1191
        %v1193 = vrot.slane %v1178, 4
        %v1194 = vadd.f32 %v1178, %v1193
        %v1195 = vrot.slane %v1194, 2
        %v1196 = vadd.f32 %v1194, %v1195
        %v1197 = vrot.slane %v1196, 1
        %v1198 = vadd.f32 %v1196, %v1197
        %v1199 = vrot.slane %v1180, 4
        %v1200 = vadd.f32 %v1180, %v1199
        %v1201 = vrot.slane %v1200, 2
        %v1202 = vadd.f32 %v1200, %v1201
        %v1203 = vrot.slane %v1202, 1
        %v1204 = vadd.f32 %v1202, %v1203
        %v1205 = vrot.slane %v1182, 4
        %v1206 = vadd.f32 %v1182, %v1205
        %v1207 = vrot.slane %v1206, 2
        %v1208 = vadd.f32 %v1206, %v1207
        %v1209 = vrot.slane %v1208, 1
        %v1210 = vadd.f32 %v1208, %v1209
        %v1211 = vrot.slane %v1184, 4
        %v1212 = vadd.f32 %v1184, %v1211
        %v1213 = vrot.slane %v1212, 2
        %v1214 = vadd.f32 %v1212, %v1213
        %v1215 = vrot.slane %v1214, 1
        %v1216 = vadd.f32 %v1214, %v1215
        %v1217 = vrot.slane %v1186, 4
        %v1218 = vadd.f32 %v1186, %v1217
        %v1219 = vrot.slane %v1218, 2
        %v1220 = vadd.f32 %v1218, %v1219
        %v1221 = vrot.slane %v1220, 1
        %v1222 = vadd.f32 %v1220, %v1221
        %v1223 = vrot.slane %v1188, 4
        %v1224 = vadd.f32 %v1188, %v1223
        %v1225 = vrot.slane %v1224, 2
        %v1226 = vadd.f32 %v1224, %v1225
        %v1227 = vrot.slane %v1226, 1
        %v1228 = vadd.f32 %v1226, %v1227
        %v1229 = vrot.slane %v1190, 4
        %v1230 = vadd.f32 %v1190, %v1229
        %v1231 = vrot.slane %v1230, 2
        %v1232 = vadd.f32 %v1230, %v1231
        %v1233 = vrot.slane %v1232, 1
        %v1234 = vadd.f32 %v1232, %v1233
        %v1235 = vrot.slane %v1192, 4
        %v1236 = vadd.f32 %v1192, %v1235
        %v1237 = vrot.slane %v1236, 2
        %v1238 = vadd.f32 %v1236, %v1237
        %v1239 = vrot.slane %v1238, 1
        %v1240 = vadd.f32 %v1238, %v1239
        %v1241 = vmax.f32 %v1198, 1e-30
        %v1242 = vmax.f32 %v1204, 1e-30
        %v1243 = vmax.f32 %v1210, 1e-30
        %v1244 = vmax.f32 %v1216, 1e-30
        %v1245 = vmax.f32 %v1222, 1e-30
        %v1246 = vmax.f32 %v1228, 1e-30
        %v1247 = vmax.f32 %v1234, 1e-30
        %v1248 = vmax.f32 %v1240, 1e-30
        %v1249 = vrcp.pop %v1241
        %v1250 = vrcp.pop %v1242
        %v1251 = vrcp.pop %v1243
        %v1252 = vrcp.pop %v1244
        %v1253 = vrcp.pop %v1245
        %v1254 = vrcp.pop %v1246
        %v1255 = vrcp.pop %v1247
        %v1256 = vrcp.pop %v1248
        %v1257 = vmul.f32 %v1178, %v1249
        %v1258 = vmul.f32 %v1180, %v1250
        %v1259 = vmul.f32 %v1182, %v1251
        %v1260 = vmul.f32 %v1184, %v1252
        %v1261 = vmul.f32 %v1186, %v1253
        %v1262 = vmul.f32 %v1188, %v1254
        %v1263 = vmul.f32 %v1190, %v1255
        %v1264 = vmul.f32 %v1192, %v1256
        %v1265 = vld [vmem:[%s468] sm:$0xf]
        %v1266 = vld [vmem:[%s468 + $0x4] sm:$0xf]
        %v1267 = vld [vmem:[%s468 + $0x8] sm:$0xf]
        %v1268 = vld [vmem:[%s468 + $0xc] sm:$0xf]
        %v1269 = vld [vmem:[%s468 + $0x10] sm:$0xf]
        %v1270 = vld [vmem:[%s468 + $0x14] sm:$0xf]
        %v1271 = vld [vmem:[%s468 + $0x18] sm:$0xf]
        %v1272 = vld [vmem:[%s468 + $0x1c] sm:$0xf]
        %v1273 = vunpack.c.l.bf16 %v1265
        %v1274 = vunpack.c.l.bf16 %v1266
        %v1275 = vunpack.c.l.bf16 %v1267
        %v1276 = vunpack.c.l.bf16 %v1268
        %v1277 = vunpack.c.l.bf16 %v1269
        %v1278 = vunpack.c.l.bf16 %v1270
        %v1279 = vunpack.c.l.bf16 %v1271
        %v1280 = vunpack.c.l.bf16 %v1272
        %v1281 = vmul.f32 %v792, %v477
        %v1282 = vmul.f32 %v1273, %v1257
        %v1283 = vmul.f32 %v1274, %v1258
        %v1284 = vmul.f32 %v1275, %v1259
        %v1285 = vmul.f32 %v1276, %v1260
        %v1286 = vmul.f32 %v1277, %v1261
        %v1287 = vmul.f32 %v1278, %v1262
        %v1288 = vmul.f32 %v1279, %v1263
        %v1289 = vmul.f32 %v1280, %v1264
        %v1290 = vrot.slane %v1282, 4
        %v1291 = vadd.f32 %v1282, %v1290
        %v1292 = vrot.slane %v1291, 2
        %v1293 = vadd.f32 %v1291, %v1292
        %v1294 = vrot.slane %v1293, 1
        %v1295 = vadd.f32 %v1293, %v1294
        %v1296 = vrot.slane %v1283, 4
        %v1297 = vadd.f32 %v1283, %v1296
        %v1298 = vrot.slane %v1297, 2
        %v1299 = vadd.f32 %v1297, %v1298
        %v1300 = vrot.slane %v1299, 1
        %v1301 = vadd.f32 %v1299, %v1300
        %v1302 = vrot.slane %v1284, 4
        %v1303 = vadd.f32 %v1284, %v1302
        %v1304 = vrot.slane %v1303, 2
        %v1305 = vadd.f32 %v1303, %v1304
        %v1306 = vrot.slane %v1305, 1
        %v1307 = vadd.f32 %v1305, %v1306
        %v1308 = vrot.slane %v1285, 4
        %v1309 = vadd.f32 %v1285, %v1308
        %v1310 = vrot.slane %v1309, 2
        %v1311 = vadd.f32 %v1309, %v1310
        %v1312 = vrot.slane %v1311, 1
        %v1313 = vadd.f32 %v1311, %v1312
        %v1314 = vrot.slane %v1286, 4
        %v1315 = vadd.f32 %v1286, %v1314
        %v1316 = vrot.slane %v1315, 2
        %v1317 = vadd.f32 %v1315, %v1316
        %v1318 = vrot.slane %v1317, 1
        %v1319 = vadd.f32 %v1317, %v1318
        %v1320 = vrot.slane %v1287, 4
        %v1321 = vadd.f32 %v1287, %v1320
        %v1322 = vrot.slane %v1321, 2
        %v1323 = vadd.f32 %v1321, %v1322
        %v1324 = vrot.slane %v1323, 1
        %v1325 = vadd.f32 %v1323, %v1324
        %v1326 = vrot.slane %v1288, 4
        %v1327 = vadd.f32 %v1288, %v1326
        %v1328 = vrot.slane %v1327, 2
        %v1329 = vadd.f32 %v1327, %v1328
        %v1330 = vrot.slane %v1329, 1
        %v1331 = vadd.f32 %v1329, %v1330
        %v1332 = vrot.slane %v1289, 4
        %v1333 = vadd.f32 %v1289, %v1332
        %v1334 = vrot.slane %v1333, 2
        %v1335 = vadd.f32 %v1333, %v1334
        %v1336 = vrot.slane %v1335, 1
        %v1337 = vadd.f32 %v1335, %v1336
        %v1346 = vsel %vm705, %v1301, %v1295
        %v1347 = vsel %vm707, %v1307, %v1346
        %v1348 = vsel %vm709, %v1313, %v1347
        %v1349 = vsel %vm711, %v1319, %v1348
        %v1350 = vsel %vm713, %v1325, %v1349
        %v1351 = vsel %vm715, %v1331, %v1350
        %v1352 = vsel %vm717, %v1337, %v1351
        %v1354 = vadd.f32 %v1281, %v1352
        %v1355 = vtanh.pop %v1354
        %v1356 = vmul.f32 %v807, %v1355
        %1357 = vst [vmem:[%s442] sm:$0xff] %v1356
        %1358 = vst [vmem:[%s449] sm:$0xff] %v1354
        %s1359 = sand.u32 %s272, 1
        %s1360 = scalar_lea.sflag [#allocation3], %s1359
        %s1361 = sand.u32 %s272, 1
        %s1362 = smul.addr %s1361, 8
        %s1363 = scalar_lea.vmem [#allocation2], %s1362
        %s1364 = sand.u32 %s298, 1
        %s1365 = scalar_lea.sflag [#allocation5], %s1364
        %s1366 = sand.u32 %s298, 1
        %s1367 = smul.addr %s1366, 8
        %s1368 = scalar_lea.vmem [#allocation4], %s1367
        // Predicated region
        $region61: #{_lambda_.1} parent=59 // pred_check
          %p1369 = pneg %p282
        $region62: #{_lambda_.1} parent=59 // pred_check_branch
          %1371 = sbr.rel (%p1369) target = $region64
        $region63: #{_lambda_.1} parent=59 // pred_region
          %1373 = vsyncadd %s1360, 0
          %s1374 = smul.addr %s29, 8
          %s1375 = scalar_lea.hbm %s10, %s1374
          %s1377 = sshll.u32 %s1363, 4
          %s1378 = int_to_ptr.vmem [resolvable:$true] %s1377
          %s1379 = sshll.u32 %s1375, 4
          %s1380 = int_to_ptr.hbm [resolvable:$true] %s1379
          %1382 = dma.vmem_to_hbm [thread:$0]  %s1378, 128, %s1380, %s1360
        $region64: #{_lambda_.1} parent=59 // pred_fallthru
          _
        // Predicated region
        $region65: #{_lambda_.1} parent=59 // pred_check
          %p1383 = pneg %p308
        $region66: #{_lambda_.1} parent=59 // pred_check_branch
          %1385 = sbr.rel (%p1383) target = $region68
        $region67: #{_lambda_.1} parent=59 // pred_region
          %1387 = vsyncadd %s1365, 0
          %s1388 = smul.addr %s29, 8
          %s1389 = scalar_lea.hbm %s11, %s1388
          %s1391 = sshll.u32 %s1368, 4
          %s1392 = int_to_ptr.vmem [resolvable:$true] %s1391
          %s1393 = sshll.u32 %s1389, 4
          %s1394 = int_to_ptr.hbm [resolvable:$true] %s1393
          %1396 = dma.vmem_to_hbm [thread:$0]  %s1392, 128, %s1394, %s1365
        $region68: #{_lambda_.1} parent=59 // pred_fallthru
          _
      $region60: #{_lambda_.1} parent=5 // pred_fallthru
        _
      %p1397 = scmp.le.s32.totalorder 2, %s24
      // Predicated region
      $region69: #{_lambda_.1} parent=5 // pred_check
        %p1398 = pneg %p1397
      $region70: #{_lambda_.1} parent=5 // pred_check_branch
        %1400 = sbr.rel (%p1398) target = $region72
      $region71: #{_lambda_.1} parent=5 // pred_region
        %s1401 = ssub.s32 %s24, 2
        // Predicated region
        $region73: #{_lambda_.1} parent=71 // pred_check
          %p1402 = pneg %p288
        $region74: #{_lambda_.1} parent=71 // pred_check_branch
          %1404 = sbr.rel (%p1402) target = $region76
        $region75: #{_lambda_.1} parent=71 // pred_region
          %s1405 = sand.u32 %s273, 1
          %s1406 = scalar_lea.sflag [#allocation3], %s1405
          %s1407 = sand.u32 %s273, 1
          %s1408 = smul.addr %s1407, 8
          %s1409 = scalar_lea.vmem [#allocation2], %s1408
          %1411 = dma.done %s1406, 128
        $region76: #{_lambda_.1} parent=71 // pred_fallthru
          _
        // Predicated region
        $region77: #{_lambda_.1} parent=71 // pred_check
          %p1412 = pneg %p314
        $region78: #{_lambda_.1} parent=71 // pred_check_branch
          %1414 = sbr.rel (%p1412) target = $region80
        $region79: #{_lambda_.1} parent=71 // pred_region
          %s1415 = sand.u32 %s299, 1
          %s1416 = scalar_lea.sflag [#allocation5], %s1415
          %s1417 = sand.u32 %s299, 1
          %s1418 = smul.addr %s1417, 8
          %s1419 = scalar_lea.vmem [#allocation4], %s1418
          %1421 = dma.done %s1416, 128
        $region80: #{_lambda_.1} parent=71 // pred_fallthru
          _
      $region72: #{_lambda_.1} parent=5 // pred_fallthru
        _
    $region6: #{_lambda_.1} parent=1 // loop_footer
      %s28 = sadd.s32 1, %s24
    $region7: #{_lambda_.1} parent=1 // loop_footer_branch
      %23 = sbr.rel target = $region3
    $region8: #{_lambda_.1} parent=1 // loop_exit
      _
    %1422 = vsyncpa [#allocation3], 1
    %s1423 = scalar_lea.sflag [#allocation3], 1
    %1424 = vsyncpa %s1423, 1
    %1425 = vsyncpa [#allocation5], 1
    %s1426 = scalar_lea.sflag [#allocation5], 1
    %1427 = vsyncpa %s1426, 1

</llo_original>
